<compile_context>
chip_gen: v7x
topology: tpu7x:2x2x1
jax: 0.10.0
libtpu: 0.0.40
codegen_flags: <defaults>
</compile_context>

<pallas_src>
import functools
import math

import jax
import jax.numpy as jnp
from jax.experimental import pallas as pl
from jax.experimental.pallas import tpu as pltpu


def _round_up(x, m):
    return (x + m - 1) // m * m


def _vmem_capacity_bytes():
    """Physical VMEM per TensorCore (128 MiB on v5e/v6e, 64 MiB on v7x)."""
    try:
        cap = int(pltpu.get_tpu_info().vmem_capacity_bytes)
        if cap > 0:
            return cap
    except Exception:
        pass
    return 64 * 1024 * 1024  # conservative (v7x-sized) fallback


def _ffn_kernel(x_ref, w1_ref, b1_ref, w2_ref, b2_ref, o_ref, *scratch,
                approximate_gelu, ew_dtype):
    # f32 output -> accumulate straight into the resident output tile;
    # otherwise use the dedicated f32 VMEM scratch accumulator.
    acc_ref = scratch[0] if scratch else o_ref
    k = pl.program_id(1)

    @pl.when(k == 0)
    def _init():
        acc_ref[...] = jnp.zeros_like(acc_ref)

    # First matmul: (tm, D) @ (D, tf) -> f32 (tm, tf).  x is cast to the MXU
    # input dtype in-kernel so the wrapper never materializes a casted copy.
    x = x_ref[...].astype(w1_ref.dtype)
    h = jnp.dot(x, w1_ref[...], preferred_element_type=jnp.float32)

    # Bias + GELU in `ew_dtype` (bf16 on the tanh path halves VALU/EUP work on
    # v6e/v7x; f32 kept for the exact-erf PyTorch-parity path).
    h = h.astype(ew_dtype) + b1_ref[...].astype(ew_dtype)
    if approximate_gelu:
        # tanh-approx GELU runs on the EUP slot (essentially free).
        h = jax.nn.gelu(h, approximate=True)
    else:
        # Exact erf-based GELU (PyTorch F.gelu default).
        h = 0.5 * h * (1.0 + jax.lax.erf(h * (1.0 / math.sqrt(2.0))))

    # TODO(synk): dropout omitted (inference identity); training-mode dropout
    # would use pltpu.prng_seed + pltpu.prng_random_bits to build the mask.

    # Second matmul: accumulate this F-tile's (tm, D) contribution in f32.
    acc_ref[...] += jnp.dot(h.astype(w2_ref.dtype), w2_ref[...],
                            preferred_element_type=jnp.float32)

    @pl.when(k == pl.num_programs(1) - 1)
    def _finalize():
        o_ref[...] = (acc_ref[...] + b2_ref[...]).astype(o_ref.dtype)


def _pick_tiles(R, D, F_pad, xb, cb, ob, need_acc, cap, tm, max_ffn_tile):
    """Generation-aware tile selection. Returns (tm_eff, tf_eff, footprint)."""
    budget = int(0.75 * cap)               # headroom for compiler scratch
    sub = 16 if xb < 4 else 8              # sublane pack of the x tile

    if tm is None:
        tm = 1024 if cap >= 96 * 1024 * 1024 else 512   # 128 MiB vs 64 MiB VMEM
    # Keep >=2 row tiles so the "parallel" axis feeds both v7x TensorCores,
    # and never exceed the (sublane-rounded) row count.
    tm_eff = min(_round_up(tm, sub),
                 max(sub, _round_up((R + 1) // 2, sub)),
                 max(sub, _round_up(R, sub)))

    def footprint(tm_, tf_):
        return (2 * tm_ * D * xb            # x tile (double-buffered)
                + 2 * D * tf_ * cb          # W1 tile
                + 2 * tf_ * 4               # b1 tile
                + 2 * tf_ * D * cb          # W2 tile
                + 2 * D * 4                 # b2
                + 2 * tm_ * D * ob          # output tile
                + (tm_ * D * 4 if need_acc else 0)   # f32 scratch accumulator
                + tm_ * tf_ * 4)            # live (tm, tf) intermediate

    # Candidate F tiles: multiples of 128 dividing F_pad, largest first.
    cands = [c for c in range(F_pad, 0, -128) if F_pad % c == 0]
    if max_ffn_tile is not None:
        cands = [c for c in cands if c <= max(128, max_ffn_tile)] or [128]

    tf_eff = None
    for c in cands:
        if footprint(tm_eff, c) <= budget:
            tf_eff = c                      # largest fitting F tile
            break                           # == F_pad -> weight-resident path
    if tf_eff is None:
        tf_eff = cands[-1]
        while footprint(tm_eff, tf_eff) > budget and tm_eff > sub:
            tm_eff = max(sub, _round_up(tm_eff // 2, sub))

    return tm_eff, tf_eff, footprint(tm_eff, tf_eff)


def positionwise_ffn(x, w1, b1, w2, b2, *, tm=None, max_ffn_tile=None,
                     compute_dtype=jnp.bfloat16, approximate_gelu=True,
                     out_dtype=None):
    """x: [B, S, D]; w1: [D, F]; b1: [F]|[1,F]; w2: [F, D]; b2: [D]|[1,D]."""
    B, S, D = x.shape
    Dw, Fdim = w1.shape
    assert Dw == D and w2.shape == (Fdim, D)
    if out_dtype is None:
        out_dtype = x.dtype
    compute_dtype = jnp.dtype(compute_dtype)
    out_dtype = jnp.dtype(out_dtype)
    xb = jnp.dtype(x.dtype).itemsize
    cb = compute_dtype.itemsize
    ob = out_dtype.itemsize

    # Element-wise (bias + GELU) dtype: bf16 on the tanh path, else f32.
    ew_dtype = compute_dtype if (approximate_gelu and
                                 compute_dtype == jnp.bfloat16) else jnp.float32

    R = B * S
    x2d = x.reshape(R, D)                  # contiguous reshape; no cast / pad

    w1c = w1.astype(compute_dtype)
    w2c = w2.astype(compute_dtype)
    b1f = b1.reshape(1, Fdim).astype(jnp.float32)
    b2f = b2.reshape(1, D).astype(jnp.float32)

    # Pad FFN dim to a lane multiple; zero W1 columns / zero b1 / zero W2 rows
    # are numerically inert (gelu(0) == 0).
    F_pad = _round_up(Fdim, 128)
    if F_pad != Fdim:
        w1c = jnp.pad(w1c, ((0, 0), (0, F_pad - Fdim)))
        b1f = jnp.pad(b1f, ((0, 0), (0, F_pad - Fdim)))
        w2c = jnp.pad(w2c, ((0, F_pad - Fdim), (0, 0)))

    need_acc = out_dtype != jnp.dtype(jnp.float32)
    cap = _vmem_capacity_bytes()
    tm_eff, tf_eff, fp_bytes = _pick_tiles(R, D, F_pad, xb, cb, ob,
                                           need_acc, cap, tm, max_ffn_tile)
    n_row_tiles = int(pl.cdiv(R, tm_eff))
    n_k = F_pad // tf_eff
    grid = (n_row_tiles, n_k)

    # Clamp the scoped-VMEM request to the chip's physical capacity.
    vmem_limit = int(min(cap, max(32 * 1024 * 1024, int(1.3 * fp_bytes))))

    # Weights are re-streamed once per row tile unless the reduction collapses
    # to a single step (grid-invariant block index -> one DMA total).
    weight_passes = 1 if n_k == 1 else n_row_tiles
    cost = pl.CostEstimate(
        flops=4 * R * D * Fdim,
        transcendentals=R * Fdim,
        bytes_accessed=int(R * D * xb + weight_passes * 2 * D * F_pad * cb
                           + R * D * ob + F_pad * 4 + D * 4))

    kernel = functools.partial(_ffn_kernel, approximate_gelu=approximate_gelu,
                               ew_dtype=ew_dtype)
    scratch_shapes = ([pltpu.VMEM((tm_eff, D), jnp.float32)] if need_acc else [])

    def _run(single_buffer_weights):
        wkw = ({"pipeline_mode": pl.Buffered(1)} if single_buffer_weights else {})
        in_specs = [
            pl.BlockSpec((tm_eff, D), lambda i, k: (i, 0)),          # x row tile
            pl.BlockSpec((D, tf_eff), lambda i, k: (0, k), **wkw),   # W1 tile
            pl.BlockSpec((1, tf_eff), lambda i, k: (0, k)),          # b1 tile
            pl.BlockSpec((tf_eff, D), lambda i, k: (k, 0), **wkw),   # W2 tile
            pl.BlockSpec((1, D), lambda i, k: (0, 0)),               # b2
        ]
        return pl.pallas_call(
            kernel,
            out_shape=jax.ShapeDtypeStruct((R, D), out_dtype),
            grid_spec=pltpu.PrefetchScalarGridSpec(
                num_scalar_prefetch=0,
                grid=grid,
                in_specs=in_specs,
                out_specs=pl.BlockSpec((tm_eff, D), lambda i, k: (i, 0)),
                scratch_shapes=scratch_shapes,
            ),
            compiler_params=pltpu.CompilerParams(
                dimension_semantics=("parallel", "arbitrary"),
                vmem_limit_bytes=vmem_limit,
            ),
            cost_estimate=cost,
        )(x2d, w1c, b1f, w2c, b2f)

    if n_k == 1:
        # Grid-invariant weights: single-buffer them (halves their VMEM
        # footprint, matters on v7x); fall back to defaults if unsupported.
        try:
            out2d = _run(True)
        except Exception:
            out2d = _run(False)
    else:
        out2d = _run(False)

    return out2d.reshape(B, S, D)


def init_params(key, model_dim, ffn_dim, dtype=jnp.float32):
    # Mimic nn.Linear default init: U(-1/sqrt(fan_in), 1/sqrt(fan_in)).
    k1, k2, k3, k4 = jax.random.split(key, 4)
    bound1 = 1.0 / math.sqrt(model_dim)
    bound2 = 1.0 / math.sqrt(ffn_dim)
    # Stored as [in, out] (transpose of PyTorch's [out, in]).
    w1 = jax.random.uniform(k1, (model_dim, ffn_dim), dtype, -bound1, bound1)
    b1 = jax.random.uniform(k2, (1, ffn_dim), dtype, -bound1, bound1)
    w2 = jax.random.uniform(k3, (ffn_dim, model_dim), dtype, -bound2, bound2)
    b2 = jax.random.uniform(k4, (1, model_dim), dtype, -bound2, bound2)
    return w1, b1, w2, b2


def reference_ffn(x, w1, b1, w2, b2):
    h = x @ w1 + b1[0]
    h = 0.5 * h * (1.0 + jax.lax.erf(h / jnp.sqrt(2.0).astype(h.dtype)))
    return h @ w2 + b2[0]


if __name__ == "__main__":
    batch, seq, model_dim, ffn_dim = 2, 8, 128, 256
    key = jax.random.PRNGKey(0)
    kx, kp = jax.random.split(key)
    x = jax.random.normal(kx, (batch, seq, model_dim), jnp.float32)
    w1, b1, w2, b2 = init_params(kp, model_dim, ffn_dim)
    ref = reference_ffn(x, w1, b1, w2, b2)

    # 1) f32 exact-GELU, weight-resident single reduction step.
    out = positionwise_ffn(x, w1, b1, w2, b2, compute_dtype=jnp.float32,
                           approximate_gelu=False)
    out = jax.block_until_ready(out)
    assert out.shape == (batch, seq, model_dim)
    assert jnp.allclose(out, ref, atol=1e-4, rtol=1e-4), "f32 resident mismatch"

    # 2) f32 exact-GELU, forced F streaming (2 reduction steps -> accumulation).
    out_s = positionwise_ffn(x, w1, b1, w2, b2, compute_dtype=jnp.float32,
                             approximate_gelu=False, max_ffn_tile=128)
    out_s = jax.block_until_ready(out_s)
    assert jnp.allclose(out_s, ref, atol=1e-4, rtol=1e-4), "f32 streaming mismatch"

    # 3) Default inference path: bf16 MXU inputs + tanh GELU, f32 accumulation.
    out_bf = positionwise_ffn(x, w1, b1, w2, b2)
    out_bf = jax.block_until_ready(out_bf)
    assert jnp.allclose(out_bf, ref, atol=5e-2, rtol=5e-2), "bf16 mismatch"

    # 4) Non-128 FFN dim + non-dividing row count (F padding + partial row tile).
    x_odd = jax.random.normal(kx, (2, 7, model_dim), jnp.float32)
    w1o, b1o, w2o, b2o = init_params(kp, model_dim, 200)
    ref_odd = reference_ffn(x_odd, w1o, b1o, w2o, b2o)
    out_odd = positionwise_ffn(x_odd, w1o, b1o, w2o, b2o,
                               compute_dtype=jnp.float32, approximate_gelu=False)
    out_odd = jax.block_until_ready(out_odd)
    assert jnp.allclose(out_odd, ref_odd, atol=1e-4, rtol=1e-4), "odd-shape mismatch"

    # 5) bf16 activations in / bf16 out (exercises the f32 scratch accumulator).
    out_b16 = positionwise_ffn(x.astype(jnp.bfloat16), w1, b1, w2, b2)
    out_b16 = jax.block_until_ready(out_b16)
    assert out_b16.dtype == jnp.bfloat16
    assert jnp.allclose(out_b16.astype(jnp.float32), ref,
                        atol=5e-2, rtol=5e-2), "bf16-out mismatch"

    print("KERNEL_OK")
</pallas_src>

<mosaic_0001>
module attributes {stable_mosaic.version = 11 : i64} {
  func.func @_ffn_kernel(%arg0: i32, %arg1: i32, %arg2: memref<8x128xf32, #tpu.memory_space<vmem>>, %arg3: memref<128x256xf32, #tpu.memory_space<vmem>>, %arg4: memref<1x256xf32, #tpu.memory_space<vmem>>, %arg5: memref<256x128xf32, #tpu.memory_space<vmem>>, %arg6: memref<1x128xf32, #tpu.memory_space<vmem>>, %arg7: memref<8x128xf32, #tpu.memory_space<vmem>>) attributes {dimension_semantics = [#tpu.dimension_semantics<parallel>, #tpu.dimension_semantics<arbitrary>], iteration_bounds = array<i64: 2, 1>, scalar_prefetch = 0 : i64, scratch_operands = 0 : i64, tpu.core_type = #tpu.core_type<tc>, window_params = [{transform_indices = @transform_0, window_bounds = array<i64: 8, 128>}, {pipeline_mode = #tpu.pipeline_mode<synchronous>, transform_indices = @transform_1, window_bounds = array<i64: 128, 256>}, {transform_indices = @transform_2, window_bounds = array<i64: 1, 256>}, {pipeline_mode = #tpu.pipeline_mode<synchronous>, transform_indices = @transform_3, window_bounds = array<i64: 256, 128>}, {pipeline_mode = #tpu.pipeline_mode<synchronous>, transform_indices = @transform_4, window_bounds = array<i64: 1, 128>}, {transform_indices = @transform_5, window_bounds = array<i64: 8, 128>}]} {
    %c0_i32 = arith.constant 0 : i32
    %0 = arith.cmpi eq, %arg1, %c0_i32 : i32
    %1 = arith.extui %0 : i1 to i32
    %c0_i32_0 = arith.constant 0 : i32
    %2 = arith.cmpi ne, %1, %c0_i32_0 : i32
    scf.if %2 {
      %cst_18 = arith.constant 0.000000e+00 : f32
      %25 = vector.broadcast %cst_18 : f32 to vector<8x128xf32>
      %c0_19 = arith.constant 0 : index
      %c0_20 = arith.constant 0 : index
      %26 = vector.load %arg7[%c0_19, %c0_20] : memref<8x128xf32, #tpu.memory_space<vmem>>, vector<8x128xf32>
      tpu.vector_store %arg7[%c0_19, %c0_20], %25 {strides = array<i32>} : memref<8x128xf32, #tpu.memory_space<vmem>>, vector<8x128xf32>,
    } else {
    }
    %c0 = arith.constant 0 : index
    %c0_1 = arith.constant 0 : index
    %3 = vector.load %arg2[%c0, %c0_1] : memref<8x128xf32, #tpu.memory_space<vmem>>, vector<8x128xf32>
    %c0_2 = arith.constant 0 : index
    %c0_3 = arith.constant 0 : index
    %4 = vector.load %arg3[%c0_2, %c0_3] : memref<128x256xf32, #tpu.memory_space<vmem>>, vector<128x256xf32>
    %cst = arith.constant dense<0.000000e+00> : vector<8x256xf32>
    %5 = tpu.matmul %3, %4, %cst {dimension_numbers = #tpu.dot_dimension_numbers<[1], [0], [0], [1], [0, 0, 1, 1], [], []>} : vector<8x128xf32>, vector<128x256xf32>, vector<8x256xf32> -> vector<8x256xf32>
    %c0_4 = arith.constant 0 : index
    %c0_5 = arith.constant 0 : index
    %6 = vector.load %arg4[%c0_4, %c0_5] : memref<1x256xf32, #tpu.memory_space<vmem>>, vector<1x256xf32>
    %7 = vector.broadcast %6 : vector<1x256xf32> to vector<8x256xf32>
    %8 = arith.addf %5, %7 : vector<8x256xf32>
    %cst_6 = arith.constant 5.000000e-01 : f32
    %9 = vector.broadcast %cst_6 : f32 to vector<8x256xf32>
    %10 = arith.mulf %9, %8 : vector<8x256xf32>
    %cst_7 = arith.constant 0.707106769 : f32
    %11 = vector.broadcast %cst_7 : f32 to vector<8x256xf32>
    %12 = arith.mulf %8, %11 : vector<8x256xf32>
    %13 = math.erf %12 : vector<8x256xf32>
    %cst_8 = arith.constant 1.000000e+00 : f32
    %14 = vector.broadcast %cst_8 : f32 to vector<8x256xf32>
    %15 = arith.addf %14, %13 : vector<8x256xf32>
    %16 = arith.mulf %10, %15 : vector<8x256xf32>
    %c0_9 = arith.constant 0 : index
    %c0_10 = arith.constant 0 : index
    %17 = vector.load %arg7[%c0_9, %c0_10] : memref<8x128xf32, #tpu.memory_space<vmem>>, vector<8x128xf32>
    %c0_11 = arith.constant 0 : index
    %c0_12 = arith.constant 0 : index
    %18 = vector.load %arg5[%c0_11, %c0_12] : memref<256x128xf32, #tpu.memory_space<vmem>>, vector<256x128xf32>
    %cst_13 = arith.constant dense<0.000000e+00> : vector<8x128xf32>
    %19 = tpu.matmul %16, %18, %cst_13 {dimension_numbers = #tpu.dot_dimension_numbers<[1], [0], [0], [1], [0, 0, 1, 1], [], []>} : vector<8x256xf32>, vector<256x128xf32>, vector<8x128xf32> -> vector<8x128xf32>
    %20 = arith.addf %17, %19 : vector<8x128xf32>
    %c0_14 = arith.constant 0 : index
    %c0_15 = arith.constant 0 : index
    %21 = vector.load %arg7[%c0_14, %c0_15] : memref<8x128xf32, #tpu.memory_space<vmem>>, vector<8x128xf32>
    tpu.vector_store %arg7[%c0_14, %c0_15], %20 {strides = array<i32>} : memref<8x128xf32, #tpu.memory_space<vmem>>, vector<8x128xf32>,
    %c0_i32_16 = arith.constant 0 : i32
    %22 = arith.cmpi eq, %arg1, %c0_i32_16 : i32
    %23 = arith.extui %22 : i1 to i32
    %c0_i32_17 = arith.constant 0 : i32
    %24 = arith.cmpi ne, %23, %c0_i32_17 : i32
    scf.if %24 {
      %c0_18 = arith.constant 0 : index
      %c0_19 = arith.constant 0 : index
      %25 = vector.load %arg7[%c0_18, %c0_19] : memref<8x128xf32, #tpu.memory_space<vmem>>, vector<8x128xf32>
      %c0_20 = arith.constant 0 : index
      %c0_21 = arith.constant 0 : index
      %26 = vector.load %arg6[%c0_20, %c0_21] : memref<1x128xf32, #tpu.memory_space<vmem>>, vector<1x128xf32>
      %27 = vector.broadcast %26 : vector<1x128xf32> to vector<8x128xf32>
      %28 = arith.addf %25, %27 : vector<8x128xf32>
      %c0_22 = arith.constant 0 : index
      %c0_23 = arith.constant 0 : index
      %29 = vector.load %arg7[%c0_22, %c0_23] : memref<8x128xf32, #tpu.memory_space<vmem>>, vector<8x128xf32>
      tpu.vector_store %arg7[%c0_22, %c0_23], %28 {strides = array<i32>} : memref<8x128xf32, #tpu.memory_space<vmem>>, vector<8x128xf32>,
    } else {
    }
    return
  }
  func.func @transform_0(%arg0: i32, %arg1: i32) -> (i32, i32) {
    %c0_i32 = arith.constant 0 : i32
    %c0_i32_0 = arith.constant 0 : i32
    return %arg0, %c0_i32 : i32, i32
  }
  func.func @transform_1(%arg0: i32, %arg1: i32) -> (i32, i32) {
    %c0_i32 = arith.constant 0 : i32
    %c0_i32_0 = arith.constant 0 : i32
    return %c0_i32, %arg1 : i32, i32
  }
  func.func @transform_2(%arg0: i32, %arg1: i32) -> (i32, i32) {
    %c0_i32 = arith.constant 0 : i32
    %c0_i32_0 = arith.constant 0 : i32
    return %c0_i32, %arg1 : i32, i32
  }
  func.func @transform_3(%arg0: i32, %arg1: i32) -> (i32, i32) {
    %c0_i32 = arith.constant 0 : i32
    %c0_i32_0 = arith.constant 0 : i32
    return %arg1, %c0_i32 : i32, i32
  }
  func.func @transform_4(%arg0: i32, %arg1: i32) -> (i32, i32) {
    %c0_i32 = arith.constant 0 : i32
    %c0_i32_0 = arith.constant 0 : i32
    %c0_i32_1 = arith.constant 0 : i32
    return %c0_i32, %c0_i32_0 : i32, i32
  }
  func.func @transform_5(%arg0: i32, %arg1: i32) -> (i32, i32) {
    %c0_i32 = arith.constant 0 : i32
    %c0_i32_0 = arith.constant 0 : i32
    return %arg0, %c0_i32 : i32, i32
  }
}

module attributes {stable_mosaic.version = 11 : i64} {
  func.func @_ffn_kernel(%arg0: i32, %arg1: i32, %arg2: memref<8x128xf32, #tpu.memory_space<vmem>>, %arg3: memref<128x256xf32, #tpu.memory_space<vmem>>, %arg4: memref<1x256xf32, #tpu.memory_space<vmem>>, %arg5: memref<256x128xf32, #tpu.memory_space<vmem>>, %arg6: memref<1x128xf32, #tpu.memory_space<vmem>>, %arg7: memref<8x128xf32, #tpu.memory_space<vmem>>) attributes {dimension_semantics = [#tpu.dimension_semantics<parallel>, #tpu.dimension_semantics<arbitrary>], iteration_bounds = array<i64: 2, 1>, scalar_prefetch = 0 : i64, scratch_operands = 0 : i64, tpu.core_type = #tpu.core_type<tc>, window_params = [{transform_indices = @transform_0, window_bounds = array<i64: 8, 128>}, {transform_indices = @transform_1, window_bounds = array<i64: 128, 256>}, {transform_indices = @transform_2, window_bounds = array<i64: 1, 256>}, {transform_indices = @transform_3, window_bounds = array<i64: 256, 128>}, {pipeline_mode = #tpu.pipeline_mode<synchronous>, transform_indices = @transform_4, window_bounds = array<i64: 1, 128>}, {transform_indices = @transform_5, window_bounds = array<i64: 8, 128>}]} {
    %c0_i32 = arith.constant 0 : i32
    %0 = arith.cmpi eq, %arg1, %c0_i32 : i32
    %1 = arith.extui %0 : i1 to i32
    %c0_i32_0 = arith.constant 0 : i32
    %2 = arith.cmpi ne, %1, %c0_i32_0 : i32
    scf.if %2 {
      %cst_18 = arith.constant 0.000000e+00 : f32
      %25 = vector.broadcast %cst_18 : f32 to vector<8x128xf32>
      %c0_19 = arith.constant 0 : index
      %c0_20 = arith.constant 0 : index
      %26 = vector.load %arg7[%c0_19, %c0_20] : memref<8x128xf32, #tpu.memory_space<vmem>>, vector<8x128xf32>
      tpu.vector_store %arg7[%c0_19, %c0_20], %25 {strides = array<i32>} : memref<8x128xf32, #tpu.memory_space<vmem>>, vector<8x128xf32>,
    } else {
    }
    %c0 = arith.constant 0 : index
    %c0_1 = arith.constant 0 : index
    %3 = vector.load %arg2[%c0, %c0_1] : memref<8x128xf32, #tpu.memory_space<vmem>>, vector<8x128xf32>
    %c0_2 = arith.constant 0 : index
    %c0_3 = arith.constant 0 : index
    %4 = vector.load %arg3[%c0_2, %c0_3] : memref<128x256xf32, #tpu.memory_space<vmem>>, vector<128x256xf32>
    %cst = arith.constant dense<0.000000e+00> : vector<8x256xf32>
    %5 = tpu.matmul %3, %4, %cst {dimension_numbers = #tpu.dot_dimension_numbers<[1], [0], [0], [1], [0, 0, 1, 1], [], []>} : vector<8x128xf32>, vector<128x256xf32>, vector<8x256xf32> -> vector<8x256xf32>
    %c0_4 = arith.constant 0 : index
    %c0_5 = arith.constant 0 : index
    %6 = vector.load %arg4[%c0_4, %c0_5] : memref<1x256xf32, #tpu.memory_space<vmem>>, vector<1x256xf32>
    %7 = vector.broadcast %6 : vector<1x256xf32> to vector<8x256xf32>
    %8 = arith.addf %5, %7 : vector<8x256xf32>
    %cst_6 = arith.constant 5.000000e-01 : f32
    %9 = vector.broadcast %cst_6 : f32 to vector<8x256xf32>
    %10 = arith.mulf %9, %8 : vector<8x256xf32>
    %cst_7 = arith.constant 0.707106769 : f32
    %11 = vector.broadcast %cst_7 : f32 to vector<8x256xf32>
    %12 = arith.mulf %8, %11 : vector<8x256xf32>
    %13 = math.erf %12 : vector<8x256xf32>
    %cst_8 = arith.constant 1.000000e+00 : f32
    %14 = vector.broadcast %cst_8 : f32 to vector<8x256xf32>
    %15 = arith.addf %14, %13 : vector<8x256xf32>
    %16 = arith.mulf %10, %15 : vector<8x256xf32>
    %c0_9 = arith.constant 0 : index
    %c0_10 = arith.constant 0 : index
    %17 = vector.load %arg7[%c0_9, %c0_10] : memref<8x128xf32, #tpu.memory_space<vmem>>, vector<8x128xf32>
    %c0_11 = arith.constant 0 : index
    %c0_12 = arith.constant 0 : index
    %18 = vector.load %arg5[%c0_11, %c0_12] : memref<256x128xf32, #tpu.memory_space<vmem>>, vector<256x128xf32>
    %cst_13 = arith.constant dense<0.000000e+00> : vector<8x128xf32>
    %19 = tpu.matmul %16, %18, %cst_13 {dimension_numbers = #tpu.dot_dimension_numbers<[1], [0], [0], [1], [0, 0, 1, 1], [], []>} : vector<8x256xf32>, vector<256x128xf32>, vector<8x128xf32> -> vector<8x128xf32>
    %20 = arith.addf %17, %19 : vector<8x128xf32>
    %c0_14 = arith.constant 0 : index
    %c0_15 = arith.constant 0 : index
    %21 = vector.load %arg7[%c0_14, %c0_15] : memref<8x128xf32, #tpu.memory_space<vmem>>, vector<8x128xf32>
    tpu.vector_store %arg7[%c0_14, %c0_15], %20 {strides = array<i32>} : memref<8x128xf32, #tpu.memory_space<vmem>>, vector<8x128xf32>,
    %c0_i32_16 = arith.constant 0 : i32
    %22 = arith.cmpi eq, %arg1, %c0_i32_16 : i32
    %23 = arith.extui %22 : i1 to i32
    %c0_i32_17 = arith.constant 0 : i32
    %24 = arith.cmpi ne, %23, %c0_i32_17 : i32
    scf.if %24 {
      %c0_18 = arith.constant 0 : index
      %c0_19 = arith.constant 0 : index
      %25 = vector.load %arg7[%c0_18, %c0_19] : memref<8x128xf32, #tpu.memory_space<vmem>>, vector<8x128xf32>
      %c0_20 = arith.constant 0 : index
      %c0_21 = arith.constant 0 : index
      %26 = vector.load %arg6[%c0_20, %c0_21] : memref<1x128xf32, #tpu.memory_space<vmem>>, vector<1x128xf32>
      %27 = vector.broadcast %26 : vector<1x128xf32> to vector<8x128xf32>
      %28 = arith.addf %25, %27 : vector<8x128xf32>
      %c0_22 = arith.constant 0 : index
      %c0_23 = arith.constant 0 : index
      %29 = vector.load %arg7[%c0_22, %c0_23] : memref<8x128xf32, #tpu.memory_space<vmem>>, vector<8x128xf32>
      tpu.vector_store %arg7[%c0_22, %c0_23], %28 {strides = array<i32>} : memref<8x128xf32, #tpu.memory_space<vmem>>, vector<8x128xf32>,
    } else {
    }
    return
  }
  func.func @transform_0(%arg0: i32, %arg1: i32) -> (i32, i32) {
    %c0_i32 = arith.constant 0 : i32
    %c0_i32_0 = arith.constant 0 : i32
    return %arg0, %c0_i32 : i32, i32
  }
  func.func @transform_1(%arg0: i32, %arg1: i32) -> (i32, i32) {
    %c0_i32 = arith.constant 0 : i32
    %c0_i32_0 = arith.constant 0 : i32
    return %c0_i32, %arg1 : i32, i32
  }
  func.func @transform_2(%arg0: i32, %arg1: i32) -> (i32, i32) {
    %c0_i32 = arith.constant 0 : i32
    %c0_i32_0 = arith.constant 0 : i32
    return %c0_i32, %arg1 : i32, i32
  }
  func.func @transform_3(%arg0: i32, %arg1: i32) -> (i32, i32) {
    %c0_i32 = arith.constant 0 : i32
    %c0_i32_0 = arith.constant 0 : i32
    return %arg1, %c0_i32 : i32, i32
  }
  func.func @transform_4(%arg0: i32, %arg1: i32) -> (i32, i32) {
    %c0_i32 = arith.constant 0 : i32
    %c0_i32_0 = arith.constant 0 : i32
    %c0_i32_1 = arith.constant 0 : i32
    return %c0_i32, %c0_i32_0 : i32, i32
  }
  func.func @transform_5(%arg0: i32, %arg1: i32) -> (i32, i32) {
    %c0_i32 = arith.constant 0 : i32
    %c0_i32_0 = arith.constant 0 : i32
    return %arg0, %c0_i32 : i32, i32
  }
}

</mosaic_0001>

<llo_original>
// kernel: tpu_custom_call.1
$region0: #{tpu_custom_call.1}
  #allocation0 [shape = 'u32[]', space=smem, size = 0x4, offset = 0x4, fixed_abs, tag = 'smem constant byte address 0x4 - core index']
  #allocation1 [shape = 'u32[144,128]{1,0:T(1,128)}', space=vmem, size = 0x12000, scoped, tag = 'internal scratch']
  %s0 = inlined_call_operand.hbm [shape: f32[16,128], index: 0, kind: input, shape index: {}]
  %s1 = inlined_call_operand.hbm [shape: f32[128,256], index: 1, kind: input, shape index: {}]
  %s2 = inlined_call_operand.vmem [shape: f32[1,256], index: 2, kind: input, shape index: {}]
  %s3 = inlined_call_operand.hbm [shape: f32[256,128], index: 3, kind: input, shape index: {}]
  %s4 = inlined_call_operand.vmem [shape: f32[1,128], index: 4, kind: input, shape index: {}]
  %s5 = inlined_call_operand.hbm [shape: f32[16,128], index: 5, kind: output, shape index: {}]
  %s6 = sld [smem:[#allocation0]]
  $region73: #{tpu_custom_call.1} parent=0
    _
  %s8 = ssub.s32 1, %s6
  %s9 = scalar_select 0, %s8, %s6
  $region1: #{tpu_custom_call.1} parent=0
    #allocation2 [shape = 'u8[8192]{0}', space=vmem, size = 0x2000, scoped, tag = 'input window, operand 0']
    #allocation3 [shape = 's32[2]{0}', space=sflag, size = 0x8, scoped, tag = 'scoped memory for tpu_custom_call.1']
    #allocation4 [shape = 's32[2]{0}', space=sflag, size = 0x8, scoped, tag = 'scoped memory for tpu_custom_call.1']
    #allocation5 [shape = 'u8[131072]{0}', space=vmem, size = 0x20000, scoped, tag = 'input window, operand 1, single buffered']
    #allocation6 [shape = 's32[1]{0}', space=sflag, size = 0x4, scoped, tag = 'scoped memory for tpu_custom_call.1']
    #allocation7 [shape = 'u8[131072]{0}', space=vmem, size = 0x20000, scoped, tag = 'input window, operand 3, single buffered']
    #allocation8 [shape = 'u8[8192]{0}', space=vmem, size = 0x2000, scoped, tag = 'output window, operand 0']
    %10 = vsyncpa [#allocation3], 0
    %s11 = scalar_lea.sflag [#allocation3], 1
    %12 = vsyncpa %s11, 0
    %13 = vsyncpa [#allocation6], 0
    %14 = vsyncpa [#allocation4], 0
    %s15 = scalar_lea.sflag [#allocation4], 1
    %16 = vsyncpa %s15, 0
    loop: start=0, step=1, limit=4
    $region2: #{tpu_custom_call.1} parent=1 // loop_pre_header
      _
    $region3: #{tpu_custom_call.1} parent=1 // loop_header
      %s18 = sphi 0, %s22
      %p19 = scmp.ge.s32.totalorder %s18, 4
      %s25 = sphi 0, %s37
      %s26 = sphi 0, %s33
      %s27 = sphi 0, %s25
      %s28 = sphi 0, %s26
      %s29 = sphi 0, %s27
      %s30 = sphi 0, %s28
      %s40 = sphi 0, %s42
      %s43 = sphi 0, %s40
      %s44 = sphi 0, %s43
      %s60 = sphi 0, %s44
      %s66 = sphi 0, %s68
      %s69 = sphi 0, %s66
      %s70 = sphi 0, %s69
      %s86 = sphi 0, %s70
      %s92 = sphi 0, %s94
      %s95 = sphi 0, %s92
      %s96 = sphi 0, %s95
      %s112 = sphi 0, %s96
      %s118 = sphi 0, %s120
      %s121 = sphi 0, %s118
      %s122 = sphi 0, %s121
      %s138 = sphi 0, %s122
      %s142 = sphi 0, %s142
      %s144 = sphi 0, %s142
      %s145 = sphi 0, %s144
      %s159 = sphi 0, %s145
      %s165 = sphi 0, %s167
      %s168 = sphi 0, %s165
      %s169 = sphi 0, %s168
      %s185 = sphi 0, %s169
    $region4: #{tpu_custom_call.1} parent=1 // loop_header_branch
      %21 = sbr.rel (%p19) target = $region8
    $region5: #{tpu_custom_call.1} parent=1 // loop_body
      %s23 = ssub.s32 %s18, 1
      %s24 = ssub.s32 %s18, 2
      %s31 = sadd.s32 1, %s26
      %p32 = scmp.ge.s32.totalorder %s31, 1
      %s33 = scalar_select %p32, 0, %s31
      %s34 = sadd.s32 1, %s25
      %s35 = scalar_select %p32, %s34, %s25
      %p36 = scmp.ge.s32.totalorder %s35, 2
      %s37 = scalar_select %p36, 0, %s35
      %s38 = ssub.s32 %s25, %s37
      %p39 = scmp.eq.s32.totalorder %s38, 0
      %s41 = sadd.s32 %s40, 1
      %s42 = scalar_select %p39, %s40, %s41
      %p45 = pneg %p39
      %p46 = scmp.eq.s32.totalorder %s18, 1
      %p47 = por %p45, %p46
      %p48 = scmp.ne.s32.totalorder %s40, %s43
      %p49 = scmp.eq.s32.totalorder %s18, 0
      %p50 = por %p48, %p49
      %p51 = scmp.ne.s32.totalorder %s40, %s43
      %p52 = scmp.eq.s32.totalorder %s23, 1
      %p53 = por %p51, %p52
      %p54 = scmp.ne.s32.totalorder %s43, %s44
      %p55 = scmp.eq.s32.totalorder %s23, 0
      %p56 = por %p54, %p55
      %p57 = scmp.ne.s32.totalorder %s43, %s44
      %p58 = scmp.eq.s32.totalorder %s24, 1
      %p59 = por %p57, %p58
      %p61 = scmp.ne.s32.totalorder %s44, %s60
      %p62 = scmp.eq.s32.totalorder %s24, 0
      %p63 = por %p61, %p62
      %s64 = ssub.s32 %s26, %s33
      %p65 = scmp.eq.s32.totalorder %s64, 0
      %s67 = sadd.s32 %s66, 1
      %s68 = scalar_select %p65, %s66, %s67
      %p71 = pneg %p65
      %p72 = scmp.eq.s32.totalorder %s18, 1
      %p73 = por %p71, %p72
      %p74 = scmp.ne.s32.totalorder %s66, %s69
      %p75 = scmp.eq.s32.totalorder %s18, 0
      %p76 = por %p74, %p75
      %p77 = scmp.ne.s32.totalorder %s66, %s69
      %p78 = scmp.eq.s32.totalorder %s23, 1
      %p79 = por %p77, %p78
      %p80 = scmp.ne.s32.totalorder %s69, %s70
      %p81 = scmp.eq.s32.totalorder %s23, 0
      %p82 = por %p80, %p81
      %p83 = scmp.ne.s32.totalorder %s69, %s70
      %p84 = scmp.eq.s32.totalorder %s24, 1
      %p85 = por %p83, %p84
      %p87 = scmp.ne.s32.totalorder %s70, %s86
      %p88 = scmp.eq.s32.totalorder %s24, 0
      %p89 = por %p87, %p88
      %s90 = ssub.s32 %s26, %s33
      %p91 = scmp.eq.s32.totalorder %s90, 0
      %s93 = sadd.s32 %s92, 1
      %s94 = scalar_select %p91, %s92, %s93
      %p97 = pneg %p91
      %p98 = scmp.eq.s32.totalorder %s18, 1
      %p99 = por %p97, %p98
      %p100 = scmp.ne.s32.totalorder %s92, %s95
      %p101 = scmp.eq.s32.totalorder %s18, 0
      %p102 = por %p100, %p101
      %p103 = scmp.ne.s32.totalorder %s92, %s95
      %p104 = scmp.eq.s32.totalorder %s23, 1
      %p105 = por %p103, %p104
      %p106 = scmp.ne.s32.totalorder %s95, %s96
      %p107 = scmp.eq.s32.totalorder %s23, 0
      %p108 = por %p106, %p107
      %p109 = scmp.ne.s32.totalorder %s95, %s96
      %p110 = scmp.eq.s32.totalorder %s24, 1
      %p111 = por %p109, %p110
      %p113 = scmp.ne.s32.totalorder %s96, %s112
      %p114 = scmp.eq.s32.totalorder %s24, 0
      %p115 = por %p113, %p114
      %s116 = ssub.s32 %s26, %s33
      %p117 = scmp.eq.s32.totalorder %s116, 0
      %s119 = sadd.s32 %s118, 1
      %s120 = scalar_select %p117, %s118, %s119
      %p123 = pneg %p117
      %p124 = scmp.eq.s32.totalorder %s18, 1
      %p125 = por %p123, %p124
      %p126 = scmp.ne.s32.totalorder %s118, %s121
      %p127 = scmp.eq.s32.totalorder %s18, 0
      %p128 = por %p126, %p127
      %p129 = scmp.ne.s32.totalorder %s118, %s121
      %p130 = scmp.eq.s32.totalorder %s23, 1
      %p131 = por %p129, %p130
      %p132 = scmp.ne.s32.totalorder %s121, %s122
      %p133 = scmp.eq.s32.totalorder %s23, 0
      %p134 = por %p132, %p133
      %p135 = scmp.ne.s32.totalorder %s121, %s122
      %p136 = scmp.eq.s32.totalorder %s24, 1
      %p137 = por %p135, %p136
      %p139 = scmp.ne.s32.totalorder %s122, %s138
      %p140 = scmp.eq.s32.totalorder %s24, 0
      %p141 = por %p139, %p140
      %s143 = sadd.s32 %s142, 1
      %p146 = scmp.eq.s32.totalorder %s18, 1
      %p147 = scmp.ne.s32.totalorder %s142, %s144
      %p148 = scmp.eq.s32.totalorder %s18, 0
      %p149 = por %p147, %p148
      %p150 = scmp.ne.s32.totalorder %s142, %s144
      %p151 = scmp.eq.s32.totalorder %s23, 1
      %p152 = por %p150, %p151
      %p153 = scmp.ne.s32.totalorder %s144, %s145
      %p154 = scmp.eq.s32.totalorder %s23, 0
      %p155 = por %p153, %p154
      %p156 = scmp.ne.s32.totalorder %s144, %s145
      %p157 = scmp.eq.s32.totalorder %s24, 1
      %p158 = por %p156, %p157
      %p160 = scmp.ne.s32.totalorder %s145, %s159
      %p161 = scmp.eq.s32.totalorder %s24, 0
      %p162 = por %p160, %p161
      %s163 = ssub.s32 %s25, %s37
      %p164 = scmp.eq.s32.totalorder %s163, 0
      %s166 = sadd.s32 %s165, 1
      %s167 = scalar_select %p164, %s165, %s166
      %p170 = pneg %p164
      %p171 = scmp.eq.s32.totalorder %s18, 1
      %p172 = por %p170, %p171
      %p173 = scmp.ne.s32.totalorder %s165, %s168
      %p174 = scmp.eq.s32.totalorder %s18, 0
      %p175 = por %p173, %p174
      %p176 = scmp.ne.s32.totalorder %s165, %s168
      %p177 = scmp.eq.s32.totalorder %s23, 1
      %p178 = por %p176, %p177
      %p179 = scmp.ne.s32.totalorder %s168, %s169
      %p180 = scmp.eq.s32.totalorder %s23, 0
      %p181 = por %p179, %p180
      %p182 = scmp.ne.s32.totalorder %s168, %s169
      %p183 = scmp.eq.s32.totalorder %s24, 1
      %p184 = por %p182, %p183
      %p186 = scmp.ne.s32.totalorder %s169, %s185
      %p187 = scmp.eq.s32.totalorder %s24, 0
      %p188 = por %p186, %p187
      %p189 = scmp.le.s32.totalorder 1, %s18
      %p190 = scmp.lt.s32.totalorder %s18, 3
      %p191 = pnand %p189, %p190
      %p192 = pneg %p191
      // Predicated region
      $region9: #{tpu_custom_call.1} parent=5 // pred_check
        _
      $region10: #{tpu_custom_call.1} parent=5 // pred_check_branch
        %194 = sbr.rel (%p191) target = $region12
      $region11: #{tpu_custom_call.1} parent=5 // pred_region
        %s195 = ssub.s32 %s18, 1
        // Predicated region
        $region13: #{tpu_custom_call.1} parent=11 // pred_check
          %p196 = pneg %p82
        $region14: #{tpu_custom_call.1} parent=11 // pred_check_branch
          %198 = sbr.rel (%p196) target = $region16
        $region15: #{tpu_custom_call.1} parent=11 // pred_region
          %s199 = smul.u32 2, %s28
          %s201 = ssub.s32 4096, 4096
          %202 = vsyncadd [#allocation6], %s201
          %s203 = smul.addr %s199, 128
          %s204 = scalar_lea.hbm %s1, %s203
          %s205 = sshll.u32 [#allocation5], 4
          %s206 = int_to_ptr.vmem [resolvable:$true] %s205
          %211 = dma.hbm_to_vmem [thread:$0]  %s204, 4096, %s206, [#allocation6], 256, 256, 16
        $region16: #{tpu_custom_call.1} parent=11 // pred_fallthru
          _
        // Predicated region
        $region17: #{tpu_custom_call.1} parent=11 // pred_check
          %p212 = pneg %p108
        $region18: #{tpu_custom_call.1} parent=11 // pred_check_branch
          %214 = sbr.rel (%p212) target = $region20
        $region19: #{tpu_custom_call.1} parent=11 // pred_region
          %s215 = smul.u32 2, %s28
          %p216 = scmp.lt.s32.totalorder %s215, 1
          %s217 = scalar_select %p216, %s215, 1
          %s218 = scalar_lea.vmem %s2, %s217
          %s219 = smul.u32 2, %s28
        $region20: #{tpu_custom_call.1} parent=11 // pred_fallthru
          _
        // Predicated region
        $region21: #{tpu_custom_call.1} parent=11 // pred_check
          %p220 = pneg %p134
        $region22: #{tpu_custom_call.1} parent=11 // pred_check_branch
          %222 = sbr.rel (%p220) target = $region24
        $region23: #{tpu_custom_call.1} parent=11 // pred_region
          %s223 = smul.u32 32, %s28
          %s225 = ssub.s32 4096, 4096
          %226 = vsyncadd [#allocation6], %s225
          %s227 = smul.addr %s223, 128
          %s228 = scalar_lea.hbm %s3, %s227
          %s229 = sshll.u32 [#allocation7], 4
          %s230 = int_to_ptr.vmem [resolvable:$true] %s229
          %235 = dma.hbm_to_vmem [thread:$0]  %s228, 4096, %s230, [#allocation6], 128, 128, 8
        $region24: #{tpu_custom_call.1} parent=11 // pred_fallthru
          _
        // Predicated region
        $region25: #{tpu_custom_call.1} parent=11 // pred_check
          %p236 = pneg %p155
        $region26: #{tpu_custom_call.1} parent=11 // pred_check_branch
          %238 = sbr.rel (%p236) target = $region28
        $region27: #{tpu_custom_call.1} parent=11 // pred_region
          _
        $region28: #{tpu_custom_call.1} parent=11 // pred_fallthru
          _
      $region12: #{tpu_custom_call.1} parent=5 // pred_fallthru
        _
      %p239 = scmp.lt.s32.totalorder %s18, 2
      // Predicated region
      $region29: #{tpu_custom_call.1} parent=5 // pred_check
        %p240 = pneg %p239
      $region30: #{tpu_custom_call.1} parent=5 // pred_check_branch
        %242 = sbr.rel (%p240) target = $region32
      $region31: #{tpu_custom_call.1} parent=5 // pred_region
        // Predicated region
        $region33: #{tpu_custom_call.1} parent=31 // pred_check
          %p243 = pneg %p50
        $region34: #{tpu_custom_call.1} parent=31 // pred_check_branch
          %245 = sbr.rel (%p243) target = $region36
        $region35: #{tpu_custom_call.1} parent=31 // pred_region
          %s246 = sand.u32 %s40, 1
          %s247 = scalar_lea.sflag [#allocation3], %s246
          %s248 = sand.u32 %s40, 1
          %s249 = smul.addr %s248, 8
          %s250 = scalar_lea.vmem [#allocation2], %s249
          %s252 = ssub.s32 128, 128
          %253 = vsyncadd %s247, %s252
          %s254 = smul.addr %s25, 128
          %s255 = scalar_lea.hbm %s0, %s254
          %s257 = sshll.u32 %s250, 4
          %s258 = int_to_ptr.vmem [resolvable:$true] %s257
          %260 = dma.hbm_to_vmem [thread:$0]  %s255, 128, %s258, %s247
        $region36: #{tpu_custom_call.1} parent=31 // pred_fallthru
          _
      $region32: #{tpu_custom_call.1} parent=5 // pred_fallthru
        _
      %p261 = scmp.le.s32.totalorder 1, %s18
      %p262 = scmp.lt.s32.totalorder %s18, 3
      %p263 = pnand %p261, %p262
      %p264 = pneg %p263
      // Predicated region
      $region37: #{tpu_custom_call.1} parent=5 // pred_check
        _
      $region38: #{tpu_custom_call.1} parent=5 // pred_check_branch
        %266 = sbr.rel (%p263) target = $region40
      $region39: #{tpu_custom_call.1} parent=5 // pred_region
        %s267 = ssub.s32 %s18, 1
        %s268 = sand.u32 %s43, 1
        %s269 = scalar_lea.sflag [#allocation3], %s268
        %s270 = sand.u32 %s43, 1
        %s271 = smul.addr %s270, 8
        %s272 = scalar_lea.vmem [#allocation2], %s271
        // Predicated region
        $region41: #{tpu_custom_call.1} parent=39 // pred_check
          %p273 = pneg %p56
        $region42: #{tpu_custom_call.1} parent=39 // pred_check_branch
          %275 = sbr.rel (%p273) target = $region44
        $region43: #{tpu_custom_call.1} parent=39 // pred_region
          %276 = dma.done %s269, 128
        $region44: #{tpu_custom_call.1} parent=39 // pred_fallthru
          _
        // Predicated region
        $region45: #{tpu_custom_call.1} parent=39 // pred_check
          %p277 = pneg %p82
        $region46: #{tpu_custom_call.1} parent=39 // pred_check_branch
          %279 = sbr.rel (%p277) target = $region48
        $region47: #{tpu_custom_call.1} parent=39 // pred_region
          %280 = dma.done [#allocation6], 4096
        $region48: #{tpu_custom_call.1} parent=39 // pred_fallthru
          _
        // Predicated region
        $region49: #{tpu_custom_call.1} parent=39 // pred_check
          %p281 = pneg %p134
        $region50: #{tpu_custom_call.1} parent=39 // pred_check_branch
          %283 = sbr.rel (%p281) target = $region52
        $region51: #{tpu_custom_call.1} parent=39 // pred_region
          %284 = dma.done [#allocation6], 4096
        $region52: #{tpu_custom_call.1} parent=39 // pred_fallthru
          _
        %s285 = sand.u32 %s43, 1
        %s286 = scalar_lea.sflag [#allocation3], %s285
        %s287 = sand.u32 %s43, 1
        %s288 = smul.addr %s287, 8
        %s289 = scalar_lea.vmem [#allocation2], %s288
        %p290 = pneg %p56
        %p291 = pneg %p53
        %p292 = pneg %p82
        %p293 = pneg %p79
        %s294 = smul.u32 2, %s28
        %p295 = scmp.lt.s32.totalorder %s294, 1
        %s296 = scalar_select %p295, %s294, 1
        %s297 = scalar_lea.vmem %s2, %s296
        %p298 = pneg %p108
        %p299 = pneg %p105
        %p300 = pneg %p134
        %p301 = pneg %p131
        %p302 = pneg %p155
        %p303 = pneg %p152
        %p304 = pneg %p181
        %p305 = pneg %p178
        %s306 = sand.u32 %s168, 1
        %s307 = scalar_lea.sflag [#allocation4], %s306
        %s308 = sand.u32 %s168, 1
        %s309 = smul.addr %s308, 8
        %s310 = scalar_lea.vmem [#allocation8], %s309
        %s311 = smul.u32 2, %s28
        %s312 = smul.u32 2, %s28
        %p313 = scmp.lt.s32.totalorder %s312, 1
        %s314 = scalar_select %p313, %s312, 1
        %s315 = scalar_lea.vmem %s2, %s314
        %s316 = smul.u32 2, %s28
        %s317 = smul.u32 32, %s28
        %p318 = scmp.eq.s32.totalorder %s28, 0
        // Predicated region
        $region53: #{tpu_custom_call.1} parent=39 // pred_check
          %p319 = pneg %p318
        $region54: #{tpu_custom_call.1} parent=39 // pred_check_branch
          %321 = sbr.rel (%p319) target = $region56
        $region55: #{tpu_custom_call.1} parent=39 // pred_region
          %322 = vst [vmem:[%s310] sm:$0xff] 0.0
        $region56: #{tpu_custom_call.1} parent=39 // pred_fallthru
          _
        %v323 = vld [vmem:[%s272] sm:$0xff]
        %v324 = vld [vmem:[#allocation5] sm:$0xff]
        %v325 = vld [vmem:[#allocation5 + $0x8] sm:$0xff]
        %v326 = vld [vmem:[#allocation5 + $0x10] sm:$0xff]
        %v327 = vld [vmem:[#allocation5 + $0x18] sm:$0xff]
        %v328 = vld [vmem:[#allocation5 + $0x20] sm:$0xff]
        %v329 = vld [vmem:[#allocation5 + $0x28] sm:$0xff]
        %v330 = vld [vmem:[#allocation5 + $0x30] sm:$0xff]
        %v331 = vld [vmem:[#allocation5 + $0x38] sm:$0xff]
        %v332 = vld [vmem:[#allocation5 + $0x40] sm:$0xff]
        %v333 = vld [vmem:[#allocation5 + $0x48] sm:$0xff]
        %v334 = vld [vmem:[#allocation5 + $0x50] sm:$0xff]
        %v335 = vld [vmem:[#allocation5 + $0x58] sm:$0xff]
        %v336 = vld [vmem:[#allocation5 + $0x60] sm:$0xff]
        %v337 = vld [vmem:[#allocation5 + $0x68] sm:$0xff]
        %v338 = vld [vmem:[#allocation5 + $0x70] sm:$0xff]
        %v339 = vld [vmem:[#allocation5 + $0x78] sm:$0xff]
        %v340 = vld [vmem:[#allocation5 + $0x80] sm:$0xff]
        %v341 = vld [vmem:[#allocation5 + $0x88] sm:$0xff]
        %v342 = vld [vmem:[#allocation5 + $0x90] sm:$0xff]
        %v343 = vld [vmem:[#allocation5 + $0x98] sm:$0xff]
        %v344 = vld [vmem:[#allocation5 + $0xa0] sm:$0xff]
        %v345 = vld [vmem:[#allocation5 + $0xa8] sm:$0xff]
        %v346 = vld [vmem:[#allocation5 + $0xb0] sm:$0xff]
        %v347 = vld [vmem:[#allocation5 + $0xb8] sm:$0xff]
        %v348 = vld [vmem:[#allocation5 + $0xc0] sm:$0xff]
        %v349 = vld [vmem:[#allocation5 + $0xc8] sm:$0xff]
        %v350 = vld [vmem:[#allocation5 + $0xd0] sm:$0xff]
        %v351 = vld [vmem:[#allocation5 + $0xd8] sm:$0xff]
        %v352 = vld [vmem:[#allocation5 + $0xe0] sm:$0xff]
        %v353 = vld [vmem:[#allocation5 + $0xe8] sm:$0xff]
        %v354 = vld [vmem:[#allocation5 + $0xf0] sm:$0xff]
        %v355 = vld [vmem:[#allocation5 + $0xf8] sm:$0xff]
        %v356 = vld [vmem:[%s315] sm:$0x3]
        %v358 = vlaneseq
        %v359 = vshrl.u32 %v358, 7
        %v360 = vsub.s32 0, %v359
        %v361 = vrot.slane %v356, %v360
        %v362 = vlaneseq
        %v363 = vshrl.u32 %v362, 7
        %v364 = vsub.s32 1, %v363
        %v365 = vrot.slane %v356, %v364
        %368 = vmatprep.subr.mxu0 %v325
        %369 = vmatpush1.msra.mxu0 %v324
        %370 = vmatprep.subr.mxu0 %v327
        %371 = vmatpush1.msra.mxu0 %v326
        %372 = vmatprep.subr.mxu0 %v329
        %373 = vmatpush1.msra.mxu0 %v328
        %374 = vmatprep.subr.mxu0 %v331
        %375 = vmatpush1.msra.mxu0 %v330
        %376 = vmatprep.subr.mxu0 %v333
        %377 = vmatpush1.msra.mxu0 %v332
        %378 = vmatprep.subr.mxu0 %v335
        %379 = vmatpush1.msra.mxu0 %v334
        %380 = vmatprep.subr.mxu0 %v337
        %381 = vmatpush1.msra.mxu0 %v336
        %382 = vmatprep.subr.mxu0 %v339
        %383 = vmatpush1.msra.mxu0 %v338
        %384 = vmatprep.subr.mxu0 %v341
        %385 = vmatpush1.msra.mxu0 %v340
        %386 = vmatprep.subr.mxu0 %v343
        %387 = vmatpush1.msra.mxu0 %v342
        %388 = vmatprep.subr.mxu0 %v345
        %389 = vmatpush1.msra.mxu0 %v344
        %390 = vmatprep.subr.mxu0 %v347
        %391 = vmatpush1.msra.mxu0 %v346
        %392 = vmatprep.subr.mxu0 %v349
        %393 = vmatpush1.msra.mxu0 %v348
        %394 = vmatprep.subr.mxu0 %v351
        %395 = vmatpush1.msra.mxu0 %v350
        %396 = vmatprep.subr.mxu0 %v353
        %397 = vmatpush1.msra.mxu0 %v352
        %398 = vmatprep.subr.mxu0 %v355
        %399 = vmatpush1.msra.mxu0 %v354
        %400 = vmatprep.subr.mxu0 0.0
        %401 = vmatpush1.msra.mxu0 0.0
        %402 = vmatprep.subr.mxu0 0.0
        %403 = vmatpush1.msra.mxu0 0.0
        %404 = vmatprep.subr.mxu0 0.0
        %405 = vmatpush1.msra.mxu0 0.0
        %406 = vmatprep.subr.mxu0 0.0
        %407 = vmatpush1.msra.mxu0 0.0
        %408 = vmatprep.subr.mxu0 0.0
        %409 = vmatpush1.msra.mxu0 0.0
        %410 = vmatprep.subr.mxu0 0.0
        %411 = vmatpush1.msra.mxu0 0.0
        %412 = vmatprep.subr.mxu0 0.0
        %413 = vmatpush1.msra.mxu0 0.0
        %414 = vmatprep.subr.mxu0 0.0
        %415 = vmatpush1.msra.mxu0 0.0
        %416 = vmatprep.subr.mxu0 0.0
        %417 = vmatpush1.msra.mxu0 0.0
        %418 = vmatprep.subr.mxu0 0.0
        %419 = vmatpush1.msra.mxu0 0.0
        %420 = vmatprep.subr.mxu0 0.0
        %421 = vmatpush1.msra.mxu0 0.0
        %422 = vmatprep.subr.mxu0 0.0
        %423 = vmatpush1.msra.mxu0 0.0
        %424 = vmatprep.subr.mxu0 0.0
        %425 = vmatpush1.msra.mxu0 0.0
        %426 = vmatprep.subr.mxu0 0.0
        %427 = vmatpush1.msra.mxu0 0.0
        %428 = vmatprep.subr.mxu0 0.0
        %429 = vmatpush1.msra.mxu0 0.0
        %430 = vmatprep.subr.mxu0 0.0
        %431 = vmatpush1.msra.mxu0 0.0
        %432 = vmatprep.mubr.f32.mxu0 0.0
        %433 = vmatmul.mubr.f32.gmra.mrb[0].mxu0 %v323
        %v434 = vpop.f32.mrb[0].mxu0
        %v435 = vadd.f32 %v361, %v434
        %v436 = vpop.f32.mrb[0].mxu0
        %v437 = vadd.f32 %v365, %v436
        %438 = vdwg.mxu0
        %v439 = vmul.f32 %v435, 0.5
        %v440 = vmul.f32 %v437, 0.5
        %v441 = vmul.f32 %v435, 0.70710677
        %v442 = vmul.f32 %v437, 0.70710677
        %v443 = verf.f32.pop %v441
        %v444 = verf.f32.pop %v442
        %v445 = vadd.f32 %v443, 1.0
        %v446 = vadd.f32 %v444, 1.0
        %v447 = vmul.f32 %v439, %v445
        %v448 = vmul.f32 %v440, %v446
        %v449 = vld [vmem:[%s310] sm:$0xff]
        %v450 = vld [vmem:[#allocation7] sm:$0xff]
        %v451 = vld [vmem:[#allocation7 + $0x8] sm:$0xff]
        %v452 = vld [vmem:[#allocation7 + $0x10] sm:$0xff]
        %v453 = vld [vmem:[#allocation7 + $0x18] sm:$0xff]
        %v454 = vld [vmem:[#allocation7 + $0x20] sm:$0xff]
        %v455 = vld [vmem:[#allocation7 + $0x28] sm:$0xff]
        %v456 = vld [vmem:[#allocation7 + $0x30] sm:$0xff]
        %v457 = vld [vmem:[#allocation7 + $0x38] sm:$0xff]
        %v458 = vld [vmem:[#allocation7 + $0x40] sm:$0xff]
        %v459 = vld [vmem:[#allocation7 + $0x48] sm:$0xff]
        %v460 = vld [vmem:[#allocation7 + $0x50] sm:$0xff]
        %v461 = vld [vmem:[#allocation7 + $0x58] sm:$0xff]
        %v462 = vld [vmem:[#allocation7 + $0x60] sm:$0xff]
        %v463 = vld [vmem:[#allocation7 + $0x68] sm:$0xff]
        %v464 = vld [vmem:[#allocation7 + $0x70] sm:$0xff]
        %v465 = vld [vmem:[#allocation7 + $0x78] sm:$0xff]
        %v466 = vld [vmem:[#allocation7 + $0x80] sm:$0xff]
        %v467 = vld [vmem:[#allocation7 + $0x88] sm:$0xff]
        %v468 = vld [vmem:[#allocation7 + $0x90] sm:$0xff]
        %v469 = vld [vmem:[#allocation7 + $0x98] sm:$0xff]
        %v470 = vld [vmem:[#allocation7 + $0xa0] sm:$0xff]
        %v471 = vld [vmem:[#allocation7 + $0xa8] sm:$0xff]
        %v472 = vld [vmem:[#allocation7 + $0xb0] sm:$0xff]
        %v473 = vld [vmem:[#allocation7 + $0xb8] sm:$0xff]
        %v474 = vld [vmem:[#allocation7 + $0xc0] sm:$0xff]
        %v475 = vld [vmem:[#allocation7 + $0xc8] sm:$0xff]
        %v476 = vld [vmem:[#allocation7 + $0xd0] sm:$0xff]
        %v477 = vld [vmem:[#allocation7 + $0xd8] sm:$0xff]
        %v478 = vld [vmem:[#allocation7 + $0xe0] sm:$0xff]
        %v479 = vld [vmem:[#allocation7 + $0xe8] sm:$0xff]
        %v480 = vld [vmem:[#allocation7 + $0xf0] sm:$0xff]
        %v481 = vld [vmem:[#allocation7 + $0xf8] sm:$0xff]
        %482 = vmatprep.subr.mxu0 0.0
        %483 = vmatpush1.msra.mxu0 %v450
        %484 = vmatprep.subr.mxu0 0.0
        %485 = vmatpush1.msra.mxu0 %v451
        %486 = vmatprep.subr.mxu0 0.0
        %487 = vmatpush1.msra.mxu0 %v452
        %488 = vmatprep.subr.mxu0 0.0
        %489 = vmatpush1.msra.mxu0 %v453
        %490 = vmatprep.subr.mxu0 0.0
        %491 = vmatpush1.msra.mxu0 %v454
        %492 = vmatprep.subr.mxu0 0.0
        %493 = vmatpush1.msra.mxu0 %v455
        %494 = vmatprep.subr.mxu0 0.0
        %495 = vmatpush1.msra.mxu0 %v456
        %496 = vmatprep.subr.mxu0 0.0
        %497 = vmatpush1.msra.mxu0 %v457
        %498 = vmatprep.subr.mxu0 0.0
        %499 = vmatpush1.msra.mxu0 %v458
        %500 = vmatprep.subr.mxu0 0.0
        %501 = vmatpush1.msra.mxu0 %v459
        %502 = vmatprep.subr.mxu0 0.0
        %503 = vmatpush1.msra.mxu0 %v460
        %504 = vmatprep.subr.mxu0 0.0
        %505 = vmatpush1.msra.mxu0 %v461
        %506 = vmatprep.subr.mxu0 0.0
        %507 = vmatpush1.msra.mxu0 %v462
        %508 = vmatprep.subr.mxu0 0.0
        %509 = vmatpush1.msra.mxu0 %v463
        %510 = vmatprep.subr.mxu0 0.0
        %511 = vmatpush1.msra.mxu0 %v464
        %512 = vmatprep.subr.mxu0 0.0
        %513 = vmatpush1.msra.mxu0 %v465
        %514 = vmatprep.subr.mxu0 0.0
        %515 = vmatpush1.msra.mxu0 %v466
        %516 = vmatprep.subr.mxu0 0.0
        %517 = vmatpush1.msra.mxu0 %v467
        %518 = vmatprep.subr.mxu0 0.0
        %519 = vmatpush1.msra.mxu0 %v468
        %520 = vmatprep.subr.mxu0 0.0
        %521 = vmatpush1.msra.mxu0 %v469
        %522 = vmatprep.subr.mxu0 0.0
        %523 = vmatpush1.msra.mxu0 %v470
        %524 = vmatprep.subr.mxu0 0.0
        %525 = vmatpush1.msra.mxu0 %v471
        %526 = vmatprep.subr.mxu0 0.0
        %527 = vmatpush1.msra.mxu0 %v472
        %528 = vmatprep.subr.mxu0 0.0
        %529 = vmatpush1.msra.mxu0 %v473
        %530 = vmatprep.subr.mxu0 0.0
        %531 = vmatpush1.msra.mxu0 %v474
        %532 = vmatprep.subr.mxu0 0.0
        %533 = vmatpush1.msra.mxu0 %v475
        %534 = vmatprep.subr.mxu0 0.0
        %535 = vmatpush1.msra.mxu0 %v476
        %536 = vmatprep.subr.mxu0 0.0
        %537 = vmatpush1.msra.mxu0 %v477
        %538 = vmatprep.subr.mxu0 0.0
        %539 = vmatpush1.msra.mxu0 %v478
        %540 = vmatprep.subr.mxu0 0.0
        %541 = vmatpush1.msra.mxu0 %v479
        %542 = vmatprep.subr.mxu0 0.0
        %543 = vmatpush1.msra.mxu0 %v480
        %544 = vmatprep.subr.mxu0 0.0
        %545 = vmatpush1.msra.mxu0 %v481
        %546 = vmatprep.mubr.f32.mxu0 %v448
        %547 = vmatmul.mubr.f32.gmra.mrb[0].mxu0 %v447
        %v548 = vpop.f32.mrb[0].mxu0
        %v549 = vadd.f32 0.0, %v548
        %v550 = vpop.f32.mrb[0].mxu0
        %551 = vdwg.mxu0
        %v552 = vadd.f32 %v449, %v549
        %553 = vst [vmem:[%s310] sm:$0xff] %v552
        // Predicated region
        $region57: #{tpu_custom_call.1} parent=39 // pred_check
          %p554 = pneg %p318
        $region58: #{tpu_custom_call.1} parent=39 // pred_check_branch
          %556 = sbr.rel (%p554) target = $region60
        $region59: #{tpu_custom_call.1} parent=39 // pred_region
          %v557 = vld [vmem:[%s310] sm:$0xff]
          %v558 = vld [vmem:[%s4] sm:$0x1]
          %v560 = vlaneseq
          %v561 = vshrl.u32 %v560, 7
          %v562 = vsub.s32 0, %v561
          %v563 = vrot.slane %v558, %v562
          %v565 = vadd.f32 %v557, %v563
          %566 = vst [vmem:[%s310] sm:$0xff] %v565
        $region60: #{tpu_custom_call.1} parent=39 // pred_fallthru
          _
        %s567 = sand.u32 %s168, 1
        %s568 = scalar_lea.sflag [#allocation4], %s567
        %s569 = sand.u32 %s168, 1
        %s570 = smul.addr %s569, 8
        %s571 = scalar_lea.vmem [#allocation8], %s570
        // Predicated region
        $region61: #{tpu_custom_call.1} parent=39 // pred_check
          %p572 = pneg %p178
        $region62: #{tpu_custom_call.1} parent=39 // pred_check_branch
          %574 = sbr.rel (%p572) target = $region64
        $region63: #{tpu_custom_call.1} parent=39 // pred_region
          %s576 = ssub.s32 128, 128
          %577 = vsyncadd %s568, %s576
          %s578 = smul.addr %s27, 128
          %s579 = scalar_lea.hbm %s5, %s578
          %s581 = sshll.u32 %s571, 4
          %s582 = int_to_ptr.vmem [resolvable:$true] %s581
          %584 = dma.vmem_to_hbm [thread:$0]  %s582, 128, %s579, %s568
        $region64: #{tpu_custom_call.1} parent=39 // pred_fallthru
          _
      $region40: #{tpu_custom_call.1} parent=5 // pred_fallthru
        _
      %p585 = scmp.le.s32.totalorder 2, %s18
      // Predicated region
      $region65: #{tpu_custom_call.1} parent=5 // pred_check
        %p586 = pneg %p585
      $region66: #{tpu_custom_call.1} parent=5 // pred_check_branch
        %588 = sbr.rel (%p586) target = $region68
      $region67: #{tpu_custom_call.1} parent=5 // pred_region
        %s589 = ssub.s32 %s18, 2
        // Predicated region
        $region69: #{tpu_custom_call.1} parent=67 // pred_check
          %p590 = pneg %p184
        $region70: #{tpu_custom_call.1} parent=67 // pred_check_branch
          %592 = sbr.rel (%p590) target = $region72
        $region71: #{tpu_custom_call.1} parent=67 // pred_region
          %s593 = sand.u32 %s169, 1
          %s594 = scalar_lea.sflag [#allocation4], %s593
          %s595 = sand.u32 %s169, 1
          %s596 = smul.addr %s595, 8
          %s597 = scalar_lea.vmem [#allocation8], %s596
          %598 = dma.done %s594, 128
        $region72: #{tpu_custom_call.1} parent=67 // pred_fallthru
          _
      $region68: #{tpu_custom_call.1} parent=5 // pred_fallthru
        _
    $region6: #{tpu_custom_call.1} parent=1 // loop_footer
      %s22 = sadd.s32 1, %s18
    $region7: #{tpu_custom_call.1} parent=1 // loop_footer_branch
      %17 = sbr.rel target = $region3
    $region8: #{tpu_custom_call.1} parent=1 // loop_exit
      _
    %599 = vsyncpa [#allocation3], 1
    %s600 = scalar_lea.sflag [#allocation3], 1
    %601 = vsyncpa %s600, 1
    %602 = vsyncpa [#allocation6], 1
    %603 = vsyncpa [#allocation4], 1
    %s604 = scalar_lea.sflag [#allocation4], 1
    %605 = vsyncpa %s604, 1

// kernel: tpu_custom_call.1
$region0: #{tpu_custom_call.1}
  #allocation0 [shape = 'u32[]', space=smem, size = 0x4, offset = 0x4, fixed_abs, tag = 'smem constant byte address 0x4 - core index']
  #allocation1 [shape = 'u32[144,128]{1,0:T(1,128)}', space=vmem, size = 0x12000, scoped, tag = 'internal scratch']
  %s0 = inlined_call_operand.hbm [shape: f32[16,128], index: 0, kind: input, shape index: {}]
  %s1 = inlined_call_operand.hbm [shape: f32[128,256], index: 1, kind: input, shape index: {}]
  %s2 = inlined_call_operand.vmem [shape: f32[1,256], index: 2, kind: input, shape index: {}]
  %s3 = inlined_call_operand.hbm [shape: f32[256,128], index: 3, kind: input, shape index: {}]
  %s4 = inlined_call_operand.vmem [shape: f32[1,128], index: 4, kind: input, shape index: {}]
  %s5 = inlined_call_operand.hbm [shape: f32[16,128], index: 5, kind: output, shape index: {}]
  %s6 = sld [smem:[#allocation0]]
  $region73: #{tpu_custom_call.1} parent=0
    _
  %s8 = ssub.s32 1, %s6
  %s9 = scalar_select 0, %s8, %s6
  $region1: #{tpu_custom_call.1} parent=0
    #allocation2 [shape = 'u8[8192]{0}', space=vmem, size = 0x2000, scoped, tag = 'input window, operand 0']
    #allocation3 [shape = 's32[2]{0}', space=sflag, size = 0x8, scoped, tag = 'scoped memory for tpu_custom_call.1']
    #allocation4 [shape = 's32[2]{0}', space=sflag, size = 0x8, scoped, tag = 'scoped memory for tpu_custom_call.1']
    #allocation5 [shape = 'u8[131072]{0}', space=vmem, size = 0x20000, scoped, tag = 'input window, operand 1, single buffered']
    #allocation6 [shape = 's32[1]{0}', space=sflag, size = 0x4, scoped, tag = 'scoped memory for tpu_custom_call.1']
    #allocation7 [shape = 'u8[131072]{0}', space=vmem, size = 0x20000, scoped, tag = 'input window, operand 3, single buffered']
    #allocation8 [shape = 'u8[8192]{0}', space=vmem, size = 0x2000, scoped, tag = 'output window, operand 0']
    %10 = vsyncpa [#allocation3], 0
    %s11 = scalar_lea.sflag [#allocation3], 1
    %12 = vsyncpa %s11, 0
    %13 = vsyncpa [#allocation6], 0
    %14 = vsyncpa [#allocation4], 0
    %s15 = scalar_lea.sflag [#allocation4], 1
    %16 = vsyncpa %s15, 0
    loop: start=0, step=1, limit=4
    $region2: #{tpu_custom_call.1} parent=1 // loop_pre_header
      _
    $region3: #{tpu_custom_call.1} parent=1 // loop_header
      %s18 = sphi 0, %s22
      %p19 = scmp.ge.s32.totalorder %s18, 4
      %s25 = sphi 0, %s37
      %s26 = sphi 0, %s33
      %s27 = sphi 0, %s25
      %s28 = sphi 0, %s26
      %s29 = sphi 0, %s27
      %s30 = sphi 0, %s28
      %s40 = sphi 0, %s42
      %s43 = sphi 0, %s40
      %s44 = sphi 0, %s43
      %s60 = sphi 0, %s44
      %s66 = sphi 0, %s68
      %s69 = sphi 0, %s66
      %s70 = sphi 0, %s69
      %s86 = sphi 0, %s70
      %s92 = sphi 0, %s94
      %s95 = sphi 0, %s92
      %s96 = sphi 0, %s95
      %s112 = sphi 0, %s96
      %s118 = sphi 0, %s120
      %s121 = sphi 0, %s118
      %s122 = sphi 0, %s121
      %s138 = sphi 0, %s122
      %s142 = sphi 0, %s142
      %s144 = sphi 0, %s142
      %s145 = sphi 0, %s144
      %s159 = sphi 0, %s145
      %s165 = sphi 0, %s167
      %s168 = sphi 0, %s165
      %s169 = sphi 0, %s168
      %s185 = sphi 0, %s169
    $region4: #{tpu_custom_call.1} parent=1 // loop_header_branch
      %21 = sbr.rel (%p19) target = $region8
    $region5: #{tpu_custom_call.1} parent=1 // loop_body
      %s23 = ssub.s32 %s18, 1
      %s24 = ssub.s32 %s18, 2
      %s31 = sadd.s32 1, %s26
      %p32 = scmp.ge.s32.totalorder %s31, 1
      %s33 = scalar_select %p32, 0, %s31
      %s34 = sadd.s32 1, %s25
      %s35 = scalar_select %p32, %s34, %s25
      %p36 = scmp.ge.s32.totalorder %s35, 2
      %s37 = scalar_select %p36, 0, %s35
      %s38 = ssub.s32 %s25, %s37
      %p39 = scmp.eq.s32.totalorder %s38, 0
      %s41 = sadd.s32 %s40, 1
      %s42 = scalar_select %p39, %s40, %s41
      %p45 = pneg %p39
      %p46 = scmp.eq.s32.totalorder %s18, 1
      %p47 = por %p45, %p46
      %p48 = scmp.ne.s32.totalorder %s40, %s43
      %p49 = scmp.eq.s32.totalorder %s18, 0
      %p50 = por %p48, %p49
      %p51 = scmp.ne.s32.totalorder %s40, %s43
      %p52 = scmp.eq.s32.totalorder %s23, 1
      %p53 = por %p51, %p52
      %p54 = scmp.ne.s32.totalorder %s43, %s44
      %p55 = scmp.eq.s32.totalorder %s23, 0
      %p56 = por %p54, %p55
      %p57 = scmp.ne.s32.totalorder %s43, %s44
      %p58 = scmp.eq.s32.totalorder %s24, 1
      %p59 = por %p57, %p58
      %p61 = scmp.ne.s32.totalorder %s44, %s60
      %p62 = scmp.eq.s32.totalorder %s24, 0
      %p63 = por %p61, %p62
      %s64 = ssub.s32 %s26, %s33
      %p65 = scmp.eq.s32.totalorder %s64, 0
      %s67 = sadd.s32 %s66, 1
      %s68 = scalar_select %p65, %s66, %s67
      %p71 = pneg %p65
      %p72 = scmp.eq.s32.totalorder %s18, 1
      %p73 = por %p71, %p72
      %p74 = scmp.ne.s32.totalorder %s66, %s69
      %p75 = scmp.eq.s32.totalorder %s18, 0
      %p76 = por %p74, %p75
      %p77 = scmp.ne.s32.totalorder %s66, %s69
      %p78 = scmp.eq.s32.totalorder %s23, 1
      %p79 = por %p77, %p78
      %p80 = scmp.ne.s32.totalorder %s69, %s70
      %p81 = scmp.eq.s32.totalorder %s23, 0
      %p82 = por %p80, %p81
      %p83 = scmp.ne.s32.totalorder %s69, %s70
      %p84 = scmp.eq.s32.totalorder %s24, 1
      %p85 = por %p83, %p84
      %p87 = scmp.ne.s32.totalorder %s70, %s86
      %p88 = scmp.eq.s32.totalorder %s24, 0
      %p89 = por %p87, %p88
      %s90 = ssub.s32 %s26, %s33
      %p91 = scmp.eq.s32.totalorder %s90, 0
      %s93 = sadd.s32 %s92, 1
      %s94 = scalar_select %p91, %s92, %s93
      %p97 = pneg %p91
      %p98 = scmp.eq.s32.totalorder %s18, 1
      %p99 = por %p97, %p98
      %p100 = scmp.ne.s32.totalorder %s92, %s95
      %p101 = scmp.eq.s32.totalorder %s18, 0
      %p102 = por %p100, %p101
      %p103 = scmp.ne.s32.totalorder %s92, %s95
      %p104 = scmp.eq.s32.totalorder %s23, 1
      %p105 = por %p103, %p104
      %p106 = scmp.ne.s32.totalorder %s95, %s96
      %p107 = scmp.eq.s32.totalorder %s23, 0
      %p108 = por %p106, %p107
      %p109 = scmp.ne.s32.totalorder %s95, %s96
      %p110 = scmp.eq.s32.totalorder %s24, 1
      %p111 = por %p109, %p110
      %p113 = scmp.ne.s32.totalorder %s96, %s112
      %p114 = scmp.eq.s32.totalorder %s24, 0
      %p115 = por %p113, %p114
      %s116 = ssub.s32 %s26, %s33
      %p117 = scmp.eq.s32.totalorder %s116, 0
      %s119 = sadd.s32 %s118, 1
      %s120 = scalar_select %p117, %s118, %s119
      %p123 = pneg %p117
      %p124 = scmp.eq.s32.totalorder %s18, 1
      %p125 = por %p123, %p124
      %p126 = scmp.ne.s32.totalorder %s118, %s121
      %p127 = scmp.eq.s32.totalorder %s18, 0
      %p128 = por %p126, %p127
      %p129 = scmp.ne.s32.totalorder %s118, %s121
      %p130 = scmp.eq.s32.totalorder %s23, 1
      %p131 = por %p129, %p130
      %p132 = scmp.ne.s32.totalorder %s121, %s122
      %p133 = scmp.eq.s32.totalorder %s23, 0
      %p134 = por %p132, %p133
      %p135 = scmp.ne.s32.totalorder %s121, %s122
      %p136 = scmp.eq.s32.totalorder %s24, 1
      %p137 = por %p135, %p136
      %p139 = scmp.ne.s32.totalorder %s122, %s138
      %p140 = scmp.eq.s32.totalorder %s24, 0
      %p141 = por %p139, %p140
      %s143 = sadd.s32 %s142, 1
      %p146 = scmp.eq.s32.totalorder %s18, 1
      %p147 = scmp.ne.s32.totalorder %s142, %s144
      %p148 = scmp.eq.s32.totalorder %s18, 0
      %p149 = por %p147, %p148
      %p150 = scmp.ne.s32.totalorder %s142, %s144
      %p151 = scmp.eq.s32.totalorder %s23, 1
      %p152 = por %p150, %p151
      %p153 = scmp.ne.s32.totalorder %s144, %s145
      %p154 = scmp.eq.s32.totalorder %s23, 0
      %p155 = por %p153, %p154
      %p156 = scmp.ne.s32.totalorder %s144, %s145
      %p157 = scmp.eq.s32.totalorder %s24, 1
      %p158 = por %p156, %p157
      %p160 = scmp.ne.s32.totalorder %s145, %s159
      %p161 = scmp.eq.s32.totalorder %s24, 0
      %p162 = por %p160, %p161
      %s163 = ssub.s32 %s25, %s37
      %p164 = scmp.eq.s32.totalorder %s163, 0
      %s166 = sadd.s32 %s165, 1
      %s167 = scalar_select %p164, %s165, %s166
      %p170 = pneg %p164
      %p171 = scmp.eq.s32.totalorder %s18, 1
      %p172 = por %p170, %p171
      %p173 = scmp.ne.s32.totalorder %s165, %s168
      %p174 = scmp.eq.s32.totalorder %s18, 0
      %p175 = por %p173, %p174
      %p176 = scmp.ne.s32.totalorder %s165, %s168
      %p177 = scmp.eq.s32.totalorder %s23, 1
      %p178 = por %p176, %p177
      %p179 = scmp.ne.s32.totalorder %s168, %s169
      %p180 = scmp.eq.s32.totalorder %s23, 0
      %p181 = por %p179, %p180
      %p182 = scmp.ne.s32.totalorder %s168, %s169
      %p183 = scmp.eq.s32.totalorder %s24, 1
      %p184 = por %p182, %p183
      %p186 = scmp.ne.s32.totalorder %s169, %s185
      %p187 = scmp.eq.s32.totalorder %s24, 0
      %p188 = por %p186, %p187
      %p189 = scmp.le.s32.totalorder 1, %s18
      %p190 = scmp.lt.s32.totalorder %s18, 3
      %p191 = pnand %p189, %p190
      %p192 = pneg %p191
      // Predicated region
      $region9: #{tpu_custom_call.1} parent=5 // pred_check
        _
      $region10: #{tpu_custom_call.1} parent=5 // pred_check_branch
        %194 = sbr.rel (%p191) target = $region12
      $region11: #{tpu_custom_call.1} parent=5 // pred_region
        %s195 = ssub.s32 %s18, 1
        // Predicated region
        $region13: #{tpu_custom_call.1} parent=11 // pred_check
          %p196 = pneg %p82
        $region14: #{tpu_custom_call.1} parent=11 // pred_check_branch
          %198 = sbr.rel (%p196) target = $region16
        $region15: #{tpu_custom_call.1} parent=11 // pred_region
          %s199 = smul.u32 2, %s28
          %s201 = ssub.s32 4096, 4096
          %202 = vsyncadd [#allocation6], %s201
          %s203 = smul.addr %s199, 128
          %s204 = scalar_lea.hbm %s1, %s203
          %s205 = sshll.u32 [#allocation5], 4
          %s206 = int_to_ptr.vmem [resolvable:$true] %s205
          %211 = dma.hbm_to_vmem [thread:$0]  %s204, 4096, %s206, [#allocation6], 256, 256, 16
        $region16: #{tpu_custom_call.1} parent=11 // pred_fallthru
          _
        // Predicated region
        $region17: #{tpu_custom_call.1} parent=11 // pred_check
          %p212 = pneg %p108
        $region18: #{tpu_custom_call.1} parent=11 // pred_check_branch
          %214 = sbr.rel (%p212) target = $region20
        $region19: #{tpu_custom_call.1} parent=11 // pred_region
          %s215 = smul.u32 2, %s28
          %p216 = scmp.lt.s32.totalorder %s215, 1
          %s217 = scalar_select %p216, %s215, 1
          %s218 = scalar_lea.vmem %s2, %s217
          %s219 = smul.u32 2, %s28
        $region20: #{tpu_custom_call.1} parent=11 // pred_fallthru
          _
        // Predicated region
        $region21: #{tpu_custom_call.1} parent=11 // pred_check
          %p220 = pneg %p134
        $region22: #{tpu_custom_call.1} parent=11 // pred_check_branch
          %222 = sbr.rel (%p220) target = $region24
        $region23: #{tpu_custom_call.1} parent=11 // pred_region
          %s223 = smul.u32 32, %s28
          %s225 = ssub.s32 4096, 4096
          %226 = vsyncadd [#allocation6], %s225
          %s227 = smul.addr %s223, 128
          %s228 = scalar_lea.hbm %s3, %s227
          %s229 = sshll.u32 [#allocation7], 4
          %s230 = int_to_ptr.vmem [resolvable:$true] %s229
          %235 = dma.hbm_to_vmem [thread:$0]  %s228, 4096, %s230, [#allocation6], 128, 128, 8
        $region24: #{tpu_custom_call.1} parent=11 // pred_fallthru
          _
        // Predicated region
        $region25: #{tpu_custom_call.1} parent=11 // pred_check
          %p236 = pneg %p155
        $region26: #{tpu_custom_call.1} parent=11 // pred_check_branch
          %238 = sbr.rel (%p236) target = $region28
        $region27: #{tpu_custom_call.1} parent=11 // pred_region
          _
        $region28: #{tpu_custom_call.1} parent=11 // pred_fallthru
          _
      $region12: #{tpu_custom_call.1} parent=5 // pred_fallthru
        _
      %p239 = scmp.lt.s32.totalorder %s18, 2
      // Predicated region
      $region29: #{tpu_custom_call.1} parent=5 // pred_check
        %p240 = pneg %p239
      $region30: #{tpu_custom_call.1} parent=5 // pred_check_branch
        %242 = sbr.rel (%p240) target = $region32
      $region31: #{tpu_custom_call.1} parent=5 // pred_region
        // Predicated region
        $region33: #{tpu_custom_call.1} parent=31 // pred_check
          %p243 = pneg %p50
        $region34: #{tpu_custom_call.1} parent=31 // pred_check_branch
          %245 = sbr.rel (%p243) target = $region36
        $region35: #{tpu_custom_call.1} parent=31 // pred_region
          %s246 = sand.u32 %s40, 1
          %s247 = scalar_lea.sflag [#allocation3], %s246
          %s248 = sand.u32 %s40, 1
          %s249 = smul.addr %s248, 8
          %s250 = scalar_lea.vmem [#allocation2], %s249
          %s252 = ssub.s32 128, 128
          %253 = vsyncadd %s247, %s252
          %s254 = smul.addr %s25, 128
          %s255 = scalar_lea.hbm %s0, %s254
          %s257 = sshll.u32 %s250, 4
          %s258 = int_to_ptr.vmem [resolvable:$true] %s257
          %260 = dma.hbm_to_vmem [thread:$0]  %s255, 128, %s258, %s247
        $region36: #{tpu_custom_call.1} parent=31 // pred_fallthru
          _
      $region32: #{tpu_custom_call.1} parent=5 // pred_fallthru
        _
      %p261 = scmp.le.s32.totalorder 1, %s18
      %p262 = scmp.lt.s32.totalorder %s18, 3
      %p263 = pnand %p261, %p262
      %p264 = pneg %p263
      // Predicated region
      $region37: #{tpu_custom_call.1} parent=5 // pred_check
        _
      $region38: #{tpu_custom_call.1} parent=5 // pred_check_branch
        %266 = sbr.rel (%p263) target = $region40
      $region39: #{tpu_custom_call.1} parent=5 // pred_region
        %s267 = ssub.s32 %s18, 1
        %s268 = sand.u32 %s43, 1
        %s269 = scalar_lea.sflag [#allocation3], %s268
        %s270 = sand.u32 %s43, 1
        %s271 = smul.addr %s270, 8
        %s272 = scalar_lea.vmem [#allocation2], %s271
        // Predicated region
        $region41: #{tpu_custom_call.1} parent=39 // pred_check
          %p273 = pneg %p56
        $region42: #{tpu_custom_call.1} parent=39 // pred_check_branch
          %275 = sbr.rel (%p273) target = $region44
        $region43: #{tpu_custom_call.1} parent=39 // pred_region
          %276 = dma.done %s269, 128
        $region44: #{tpu_custom_call.1} parent=39 // pred_fallthru
          _
        // Predicated region
        $region45: #{tpu_custom_call.1} parent=39 // pred_check
          %p277 = pneg %p82
        $region46: #{tpu_custom_call.1} parent=39 // pred_check_branch
          %279 = sbr.rel (%p277) target = $region48
        $region47: #{tpu_custom_call.1} parent=39 // pred_region
          %280 = dma.done [#allocation6], 4096
        $region48: #{tpu_custom_call.1} parent=39 // pred_fallthru
          _
        // Predicated region
        $region49: #{tpu_custom_call.1} parent=39 // pred_check
          %p281 = pneg %p134
        $region50: #{tpu_custom_call.1} parent=39 // pred_check_branch
          %283 = sbr.rel (%p281) target = $region52
        $region51: #{tpu_custom_call.1} parent=39 // pred_region
          %284 = dma.done [#allocation6], 4096
        $region52: #{tpu_custom_call.1} parent=39 // pred_fallthru
          _
        %s285 = sand.u32 %s43, 1
        %s286 = scalar_lea.sflag [#allocation3], %s285
        %s287 = sand.u32 %s43, 1
        %s288 = smul.addr %s287, 8
        %s289 = scalar_lea.vmem [#allocation2], %s288
        %p290 = pneg %p56
        %p291 = pneg %p53
        %p292 = pneg %p82
        %p293 = pneg %p79
        %s294 = smul.u32 2, %s28
        %p295 = scmp.lt.s32.totalorder %s294, 1
        %s296 = scalar_select %p295, %s294, 1
        %s297 = scalar_lea.vmem %s2, %s296
        %p298 = pneg %p108
        %p299 = pneg %p105
        %p300 = pneg %p134
        %p301 = pneg %p131
        %p302 = pneg %p155
        %p303 = pneg %p152
        %p304 = pneg %p181
        %p305 = pneg %p178
        %s306 = sand.u32 %s168, 1
        %s307 = scalar_lea.sflag [#allocation4], %s306
        %s308 = sand.u32 %s168, 1
        %s309 = smul.addr %s308, 8
        %s310 = scalar_lea.vmem [#allocation8], %s309
        %s311 = smul.u32 2, %s28
        %s312 = smul.u32 2, %s28
        %p313 = scmp.lt.s32.totalorder %s312, 1
        %s314 = scalar_select %p313, %s312, 1
        %s315 = scalar_lea.vmem %s2, %s314
        %s316 = smul.u32 2, %s28
        %s317 = smul.u32 32, %s28
        %p318 = scmp.eq.s32.totalorder %s28, 0
        // Predicated region
        $region53: #{tpu_custom_call.1} parent=39 // pred_check
          %p319 = pneg %p318
        $region54: #{tpu_custom_call.1} parent=39 // pred_check_branch
          %321 = sbr.rel (%p319) target = $region56
        $region55: #{tpu_custom_call.1} parent=39 // pred_region
          %322 = vst [vmem:[%s310] sm:$0xff] 0.0
        $region56: #{tpu_custom_call.1} parent=39 // pred_fallthru
          _
        %v323 = vld [vmem:[%s272] sm:$0xff]
        %v324 = vld [vmem:[#allocation5] sm:$0xff]
        %v325 = vld [vmem:[#allocation5 + $0x8] sm:$0xff]
        %v326 = vld [vmem:[#allocation5 + $0x10] sm:$0xff]
        %v327 = vld [vmem:[#allocation5 + $0x18] sm:$0xff]
        %v328 = vld [vmem:[#allocation5 + $0x20] sm:$0xff]
        %v329 = vld [vmem:[#allocation5 + $0x28] sm:$0xff]
        %v330 = vld [vmem:[#allocation5 + $0x30] sm:$0xff]
        %v331 = vld [vmem:[#allocation5 + $0x38] sm:$0xff]
        %v332 = vld [vmem:[#allocation5 + $0x40] sm:$0xff]
        %v333 = vld [vmem:[#allocation5 + $0x48] sm:$0xff]
        %v334 = vld [vmem:[#allocation5 + $0x50] sm:$0xff]
        %v335 = vld [vmem:[#allocation5 + $0x58] sm:$0xff]
        %v336 = vld [vmem:[#allocation5 + $0x60] sm:$0xff]
        %v337 = vld [vmem:[#allocation5 + $0x68] sm:$0xff]
        %v338 = vld [vmem:[#allocation5 + $0x70] sm:$0xff]
        %v339 = vld [vmem:[#allocation5 + $0x78] sm:$0xff]
        %v340 = vld [vmem:[#allocation5 + $0x80] sm:$0xff]
        %v341 = vld [vmem:[#allocation5 + $0x88] sm:$0xff]
        %v342 = vld [vmem:[#allocation5 + $0x90] sm:$0xff]
        %v343 = vld [vmem:[#allocation5 + $0x98] sm:$0xff]
        %v344 = vld [vmem:[#allocation5 + $0xa0] sm:$0xff]
        %v345 = vld [vmem:[#allocation5 + $0xa8] sm:$0xff]
        %v346 = vld [vmem:[#allocation5 + $0xb0] sm:$0xff]
        %v347 = vld [vmem:[#allocation5 + $0xb8] sm:$0xff]
        %v348 = vld [vmem:[#allocation5 + $0xc0] sm:$0xff]
        %v349 = vld [vmem:[#allocation5 + $0xc8] sm:$0xff]
        %v350 = vld [vmem:[#allocation5 + $0xd0] sm:$0xff]
        %v351 = vld [vmem:[#allocation5 + $0xd8] sm:$0xff]
        %v352 = vld [vmem:[#allocation5 + $0xe0] sm:$0xff]
        %v353 = vld [vmem:[#allocation5 + $0xe8] sm:$0xff]
        %v354 = vld [vmem:[#allocation5 + $0xf0] sm:$0xff]
        %v355 = vld [vmem:[#allocation5 + $0xf8] sm:$0xff]
        %v356 = vld [vmem:[%s315] sm:$0x3]
        %v358 = vlaneseq
        %v359 = vshrl.u32 %v358, 7
        %v360 = vsub.s32 0, %v359
        %v361 = vrot.slane %v356, %v360
        %v362 = vlaneseq
        %v363 = vshrl.u32 %v362, 7
        %v364 = vsub.s32 1, %v363
        %v365 = vrot.slane %v356, %v364
        %368 = vmatprep.subr.mxu0 %v325
        %369 = vmatpush1.msra.mxu0 %v324
        %370 = vmatprep.subr.mxu0 %v327
        %371 = vmatpush1.msra.mxu0 %v326
        %372 = vmatprep.subr.mxu0 %v329
        %373 = vmatpush1.msra.mxu0 %v328
        %374 = vmatprep.subr.mxu0 %v331
        %375 = vmatpush1.msra.mxu0 %v330
        %376 = vmatprep.subr.mxu0 %v333
        %377 = vmatpush1.msra.mxu0 %v332
        %378 = vmatprep.subr.mxu0 %v335
        %379 = vmatpush1.msra.mxu0 %v334
        %380 = vmatprep.subr.mxu0 %v337
        %381 = vmatpush1.msra.mxu0 %v336
        %382 = vmatprep.subr.mxu0 %v339
        %383 = vmatpush1.msra.mxu0 %v338
        %384 = vmatprep.subr.mxu0 %v341
        %385 = vmatpush1.msra.mxu0 %v340
        %386 = vmatprep.subr.mxu0 %v343
        %387 = vmatpush1.msra.mxu0 %v342
        %388 = vmatprep.subr.mxu0 %v345
        %389 = vmatpush1.msra.mxu0 %v344
        %390 = vmatprep.subr.mxu0 %v347
        %391 = vmatpush1.msra.mxu0 %v346
        %392 = vmatprep.subr.mxu0 %v349
        %393 = vmatpush1.msra.mxu0 %v348
        %394 = vmatprep.subr.mxu0 %v351
        %395 = vmatpush1.msra.mxu0 %v350
        %396 = vmatprep.subr.mxu0 %v353
        %397 = vmatpush1.msra.mxu0 %v352
        %398 = vmatprep.subr.mxu0 %v355
        %399 = vmatpush1.msra.mxu0 %v354
        %400 = vmatprep.subr.mxu0 0.0
        %401 = vmatpush1.msra.mxu0 0.0
        %402 = vmatprep.subr.mxu0 0.0
        %403 = vmatpush1.msra.mxu0 0.0
        %404 = vmatprep.subr.mxu0 0.0
        %405 = vmatpush1.msra.mxu0 0.0
        %406 = vmatprep.subr.mxu0 0.0
        %407 = vmatpush1.msra.mxu0 0.0
        %408 = vmatprep.subr.mxu0 0.0
        %409 = vmatpush1.msra.mxu0 0.0
        %410 = vmatprep.subr.mxu0 0.0
        %411 = vmatpush1.msra.mxu0 0.0
        %412 = vmatprep.subr.mxu0 0.0
        %413 = vmatpush1.msra.mxu0 0.0
        %414 = vmatprep.subr.mxu0 0.0
        %415 = vmatpush1.msra.mxu0 0.0
        %416 = vmatprep.subr.mxu0 0.0
        %417 = vmatpush1.msra.mxu0 0.0
        %418 = vmatprep.subr.mxu0 0.0
        %419 = vmatpush1.msra.mxu0 0.0
        %420 = vmatprep.subr.mxu0 0.0
        %421 = vmatpush1.msra.mxu0 0.0
        %422 = vmatprep.subr.mxu0 0.0
        %423 = vmatpush1.msra.mxu0 0.0
        %424 = vmatprep.subr.mxu0 0.0
        %425 = vmatpush1.msra.mxu0 0.0
        %426 = vmatprep.subr.mxu0 0.0
        %427 = vmatpush1.msra.mxu0 0.0
        %428 = vmatprep.subr.mxu0 0.0
        %429 = vmatpush1.msra.mxu0 0.0
        %430 = vmatprep.subr.mxu0 0.0
        %431 = vmatpush1.msra.mxu0 0.0
        %432 = vmatprep.mubr.f32.mxu0 0.0
        %433 = vmatmul.mubr.f32.gmra.mrb[0].mxu0 %v323
        %v434 = vpop.f32.mrb[0].mxu0
        %v435 = vadd.f32 %v361, %v434
        %v436 = vpop.f32.mrb[0].mxu0
        %v437 = vadd.f32 %v365, %v436
        %438 = vdwg.mxu0
        %v439 = vmul.f32 %v435, 0.5
        %v440 = vmul.f32 %v437, 0.5
        %v441 = vmul.f32 %v435, 0.70710677
        %v442 = vmul.f32 %v437, 0.70710677
        %v443 = verf.f32.pop %v441
        %v444 = verf.f32.pop %v442
        %v445 = vadd.f32 %v443, 1.0
        %v446 = vadd.f32 %v444, 1.0
        %v447 = vmul.f32 %v439, %v445
        %v448 = vmul.f32 %v440, %v446
        %v449 = vld [vmem:[%s310] sm:$0xff]
        %v450 = vld [vmem:[#allocation7] sm:$0xff]
        %v451 = vld [vmem:[#allocation7 + $0x8] sm:$0xff]
        %v452 = vld [vmem:[#allocation7 + $0x10] sm:$0xff]
        %v453 = vld [vmem:[#allocation7 + $0x18] sm:$0xff]
        %v454 = vld [vmem:[#allocation7 + $0x20] sm:$0xff]
        %v455 = vld [vmem:[#allocation7 + $0x28] sm:$0xff]
        %v456 = vld [vmem:[#allocation7 + $0x30] sm:$0xff]
        %v457 = vld [vmem:[#allocation7 + $0x38] sm:$0xff]
        %v458 = vld [vmem:[#allocation7 + $0x40] sm:$0xff]
        %v459 = vld [vmem:[#allocation7 + $0x48] sm:$0xff]
        %v460 = vld [vmem:[#allocation7 + $0x50] sm:$0xff]
        %v461 = vld [vmem:[#allocation7 + $0x58] sm:$0xff]
        %v462 = vld [vmem:[#allocation7 + $0x60] sm:$0xff]
        %v463 = vld [vmem:[#allocation7 + $0x68] sm:$0xff]
        %v464 = vld [vmem:[#allocation7 + $0x70] sm:$0xff]
        %v465 = vld [vmem:[#allocation7 + $0x78] sm:$0xff]
        %v466 = vld [vmem:[#allocation7 + $0x80] sm:$0xff]
        %v467 = vld [vmem:[#allocation7 + $0x88] sm:$0xff]
        %v468 = vld [vmem:[#allocation7 + $0x90] sm:$0xff]
        %v469 = vld [vmem:[#allocation7 + $0x98] sm:$0xff]
        %v470 = vld [vmem:[#allocation7 + $0xa0] sm:$0xff]
        %v471 = vld [vmem:[#allocation7 + $0xa8] sm:$0xff]
        %v472 = vld [vmem:[#allocation7 + $0xb0] sm:$0xff]
        %v473 = vld [vmem:[#allocation7 + $0xb8] sm:$0xff]
        %v474 = vld [vmem:[#allocation7 + $0xc0] sm:$0xff]
        %v475 = vld [vmem:[#allocation7 + $0xc8] sm:$0xff]
        %v476 = vld [vmem:[#allocation7 + $0xd0] sm:$0xff]
        %v477 = vld [vmem:[#allocation7 + $0xd8] sm:$0xff]
        %v478 = vld [vmem:[#allocation7 + $0xe0] sm:$0xff]
        %v479 = vld [vmem:[#allocation7 + $0xe8] sm:$0xff]
        %v480 = vld [vmem:[#allocation7 + $0xf0] sm:$0xff]
        %v481 = vld [vmem:[#allocation7 + $0xf8] sm:$0xff]
        %482 = vmatprep.subr.mxu0 0.0
        %483 = vmatpush1.msra.mxu0 %v450
        %484 = vmatprep.subr.mxu0 0.0
        %485 = vmatpush1.msra.mxu0 %v451
        %486 = vmatprep.subr.mxu0 0.0
        %487 = vmatpush1.msra.mxu0 %v452
        %488 = vmatprep.subr.mxu0 0.0
        %489 = vmatpush1.msra.mxu0 %v453
        %490 = vmatprep.subr.mxu0 0.0
        %491 = vmatpush1.msra.mxu0 %v454
        %492 = vmatprep.subr.mxu0 0.0
        %493 = vmatpush1.msra.mxu0 %v455
        %494 = vmatprep.subr.mxu0 0.0
        %495 = vmatpush1.msra.mxu0 %v456
        %496 = vmatprep.subr.mxu0 0.0
        %497 = vmatpush1.msra.mxu0 %v457
        %498 = vmatprep.subr.mxu0 0.0
        %499 = vmatpush1.msra.mxu0 %v458
        %500 = vmatprep.subr.mxu0 0.0
        %501 = vmatpush1.msra.mxu0 %v459
        %502 = vmatprep.subr.mxu0 0.0
        %503 = vmatpush1.msra.mxu0 %v460
        %504 = vmatprep.subr.mxu0 0.0
        %505 = vmatpush1.msra.mxu0 %v461
        %506 = vmatprep.subr.mxu0 0.0
        %507 = vmatpush1.msra.mxu0 %v462
        %508 = vmatprep.subr.mxu0 0.0
        %509 = vmatpush1.msra.mxu0 %v463
        %510 = vmatprep.subr.mxu0 0.0
        %511 = vmatpush1.msra.mxu0 %v464
        %512 = vmatprep.subr.mxu0 0.0
        %513 = vmatpush1.msra.mxu0 %v465
        %514 = vmatprep.subr.mxu0 0.0
        %515 = vmatpush1.msra.mxu0 %v466
        %516 = vmatprep.subr.mxu0 0.0
        %517 = vmatpush1.msra.mxu0 %v467
        %518 = vmatprep.subr.mxu0 0.0
        %519 = vmatpush1.msra.mxu0 %v468
        %520 = vmatprep.subr.mxu0 0.0
        %521 = vmatpush1.msra.mxu0 %v469
        %522 = vmatprep.subr.mxu0 0.0
        %523 = vmatpush1.msra.mxu0 %v470
        %524 = vmatprep.subr.mxu0 0.0
        %525 = vmatpush1.msra.mxu0 %v471
        %526 = vmatprep.subr.mxu0 0.0
        %527 = vmatpush1.msra.mxu0 %v472
        %528 = vmatprep.subr.mxu0 0.0
        %529 = vmatpush1.msra.mxu0 %v473
        %530 = vmatprep.subr.mxu0 0.0
        %531 = vmatpush1.msra.mxu0 %v474
        %532 = vmatprep.subr.mxu0 0.0
        %533 = vmatpush1.msra.mxu0 %v475
        %534 = vmatprep.subr.mxu0 0.0
        %535 = vmatpush1.msra.mxu0 %v476
        %536 = vmatprep.subr.mxu0 0.0
        %537 = vmatpush1.msra.mxu0 %v477
        %538 = vmatprep.subr.mxu0 0.0
        %539 = vmatpush1.msra.mxu0 %v478
        %540 = vmatprep.subr.mxu0 0.0
        %541 = vmatpush1.msra.mxu0 %v479
        %542 = vmatprep.subr.mxu0 0.0
        %543 = vmatpush1.msra.mxu0 %v480
        %544 = vmatprep.subr.mxu0 0.0
        %545 = vmatpush1.msra.mxu0 %v481
        %546 = vmatprep.mubr.f32.mxu0 %v448
        %547 = vmatmul.mubr.f32.gmra.mrb[0].mxu0 %v447
        %v548 = vpop.f32.mrb[0].mxu0
        %v549 = vadd.f32 0.0, %v548
        %v550 = vpop.f32.mrb[0].mxu0
        %551 = vdwg.mxu0
        %v552 = vadd.f32 %v449, %v549
        %553 = vst [vmem:[%s310] sm:$0xff] %v552
        // Predicated region
        $region57: #{tpu_custom_call.1} parent=39 // pred_check
          %p554 = pneg %p318
        $region58: #{tpu_custom_call.1} parent=39 // pred_check_branch
          %556 = sbr.rel (%p554) target = $region60
        $region59: #{tpu_custom_call.1} parent=39 // pred_region
          %v557 = vld [vmem:[%s310] sm:$0xff]
          %v558 = vld [vmem:[%s4] sm:$0x1]
          %v560 = vlaneseq
          %v561 = vshrl.u32 %v560, 7
          %v562 = vsub.s32 0, %v561
          %v563 = vrot.slane %v558, %v562
          %v565 = vadd.f32 %v557, %v563
          %566 = vst [vmem:[%s310] sm:$0xff] %v565
        $region60: #{tpu_custom_call.1} parent=39 // pred_fallthru
          _
        %s567 = sand.u32 %s168, 1
        %s568 = scalar_lea.sflag [#allocation4], %s567
        %s569 = sand.u32 %s168, 1
        %s570 = smul.addr %s569, 8
        %s571 = scalar_lea.vmem [#allocation8], %s570
        // Predicated region
        $region61: #{tpu_custom_call.1} parent=39 // pred_check
          %p572 = pneg %p178
        $region62: #{tpu_custom_call.1} parent=39 // pred_check_branch
          %574 = sbr.rel (%p572) target = $region64
        $region63: #{tpu_custom_call.1} parent=39 // pred_region
          %s576 = ssub.s32 128, 128
          %577 = vsyncadd %s568, %s576
          %s578 = smul.addr %s27, 128
          %s579 = scalar_lea.hbm %s5, %s578
          %s581 = sshll.u32 %s571, 4
          %s582 = int_to_ptr.vmem [resolvable:$true] %s581
          %584 = dma.vmem_to_hbm [thread:$0]  %s582, 128, %s579, %s568
        $region64: #{tpu_custom_call.1} parent=39 // pred_fallthru
          _
      $region40: #{tpu_custom_call.1} parent=5 // pred_fallthru
        _
      %p585 = scmp.le.s32.totalorder 2, %s18
      // Predicated region
      $region65: #{tpu_custom_call.1} parent=5 // pred_check
        %p586 = pneg %p585
      $region66: #{tpu_custom_call.1} parent=5 // pred_check_branch
        %588 = sbr.rel (%p586) target = $region68
      $region67: #{tpu_custom_call.1} parent=5 // pred_region
        %s589 = ssub.s32 %s18, 2
        // Predicated region
        $region69: #{tpu_custom_call.1} parent=67 // pred_check
          %p590 = pneg %p184
        $region70: #{tpu_custom_call.1} parent=67 // pred_check_branch
          %592 = sbr.rel (%p590) target = $region72
        $region71: #{tpu_custom_call.1} parent=67 // pred_region
          %s593 = sand.u32 %s169, 1
          %s594 = scalar_lea.sflag [#allocation4], %s593
          %s595 = sand.u32 %s169, 1
          %s596 = smul.addr %s595, 8
          %s597 = scalar_lea.vmem [#allocation8], %s596
          %598 = dma.done %s594, 128
        $region72: #{tpu_custom_call.1} parent=67 // pred_fallthru
          _
      $region68: #{tpu_custom_call.1} parent=5 // pred_fallthru
        _
    $region6: #{tpu_custom_call.1} parent=1 // loop_footer
      %s22 = sadd.s32 1, %s18
    $region7: #{tpu_custom_call.1} parent=1 // loop_footer_branch
      %17 = sbr.rel target = $region3
    $region8: #{tpu_custom_call.1} parent=1 // loop_exit
      _
    %599 = vsyncpa [#allocation3], 1
    %s600 = scalar_lea.sflag [#allocation3], 1
    %601 = vsyncpa %s600, 1
    %602 = vsyncpa [#allocation6], 1
    %603 = vsyncpa [#allocation4], 1
    %s604 = scalar_lea.sflag [#allocation4], 1
    %605 = vsyncpa %s604, 1

</llo_original>
